<compile_context>
chip_gen: v7x
topology: tpu7x:2x2x1
jax: 0.10.0
libtpu: 0.0.40
codegen_flags: <defaults>
</compile_context>

<pallas_src>
import functools
import math

import jax
import jax.numpy as jnp
from jax.experimental import pallas as pl
from jax.experimental.pallas import tpu as pltpu


# ----------------------------------------------------------------------------
# Small helpers
# ----------------------------------------------------------------------------

def _rup(x, m):
    return ((x + m - 1) // m) * m


def _pick_div(n, cands):
    for c in cands:
        if n % c == 0:
            return c
    return n


def _row_tile(m, c):
    """Row tile for the (rarely used) streaming fallback kernels."""
    if m * c * 4 <= (2 << 20):
        return m, m
    tr = max(8, min(2048, (2 << 20) // (c * 4)))   # ~2 MiB blocks (v5e roofline)
    tr = (tr // 8) * 8
    return tr, _rup(m, tr)


def _pad_rows(x2d, mp):
    m = x2d.shape[0]
    return x2d if mp == m else jnp.pad(x2d, ((0, mp - m), (0, 0)))


# ----------------------------------------------------------------------------
# Pallas matmul (1x1 convs, the stem and all small/strided 3x3 convs via im2col)
# ----------------------------------------------------------------------------

def _matmul_kernel(a_ref, b_ref, bias_ref, o_ref, acc_ref):
    @pl.when(pl.program_id(2) == 0)
    def _():
        # bias folded into the accumulator init (no per-K epilogue add)
        acc_ref[...] = jnp.broadcast_to(bias_ref[...], acc_ref.shape)

    acc_ref[...] += jnp.dot(a_ref[...], b_ref[...],
                            preferred_element_type=jnp.float32)

    @pl.when(pl.program_id(2) == pl.num_programs(2) - 1)
    def _():
        o_ref[...] = acc_ref[...].astype(o_ref.dtype)


def pallas_matmul(a, b, bias=None, out_dtype=jnp.bfloat16):
    """C = A @ B (+ bias). bf16 MXU inputs, f32 accumulation, bf16 (or f32) out."""
    M, K = a.shape
    K2, N = b.shape
    assert K == K2
    # Pad ragged N (num_classes=7, stem O=64) to a full 128-lane tile.
    Np = N if N % 128 == 0 else _rup(N, 128)
    # K: pad only when ragged and >=128 (the stem's 147); K<128 is a legal full-dim tile.
    Kp = K if (K % 128 == 0 or K < 128) else _rup(K, 128)
    tk = _pick_div(Kp, (512, 256, 128))
    # M tiling: prefer 256-row tiles (v6e/v7x MXU) but keep >=2 M-programs.
    Mp8 = _rup(M, 8)
    if Mp8 >= 512:
        tm = 256
    elif Mp8 >= 128:
        tm = 128
    else:
        tm = Mp8
    Mp = _rup(M, tm)
    m_grid = Mp // tm
    # N tiling: 256 only when the M grid already exposes >=2 programs (v7x TCs).
    if Np % 256 == 0 and Np >= 512 and m_grid >= 2:
        tn = 256
    else:
        tn = 128

    a = a.astype(jnp.bfloat16)
    b = b.astype(jnp.bfloat16)
    if Mp != M or Kp != K:
        a = jnp.pad(a, ((0, Mp - M), (0, Kp - K)))
    if Kp != K or Np != N:
        b = jnp.pad(b, ((0, Kp - K), (0, Np - N)))
    if bias is None:
        bias_arr = jnp.zeros((1, Np), jnp.float32)
    else:
        bias_arr = jnp.pad(bias.reshape(1, N).astype(jnp.float32),
                           ((0, 0), (0, Np - N)))

    out = pl.pallas_call(
        _matmul_kernel,
        out_shape=jax.ShapeDtypeStruct((Mp, Np), out_dtype),
        grid_spec=pltpu.PrefetchScalarGridSpec(
            num_scalar_prefetch=0,
            grid=(Mp // tm, Np // tn, Kp // tk),
            in_specs=[pl.BlockSpec((tm, tk), lambda i, j, k: (i, k)),
                      pl.BlockSpec((tk, tn), lambda i, j, k: (k, j)),
                      pl.BlockSpec((1, tn), lambda i, j, k: (0, j))],
            out_specs=pl.BlockSpec((tm, tn), lambda i, j, k: (i, j)),
            scratch_shapes=[pltpu.VMEM((tm, tn), jnp.float32)]),
        compiler_params=pltpu.CompilerParams(
            dimension_semantics=("parallel", "parallel", "arbitrary")),
    )(a, b, bias_arr)
    if Mp != M or Np != N:
        out = out[:M, :N]
    return out


# ----------------------------------------------------------------------------
# Direct (im2col-free) stride-1 3x3 conv: shifted-row GEMM, taps folded into
# the K-reduction. Padded width is rounded to a multiple of 8 so the 9 tap
# offsets collapse to 3 sublane shift phases.
# ----------------------------------------------------------------------------

_DCONV_VMEM_BUDGET = 18 << 20


def _dconv_kernel(x_ref, w_ref, *rest, taps, rows, has_bias):
    if has_bias:
        bias_ref, o_ref, acc_ref = rest
    else:
        o_ref, acc_ref = rest

    @pl.when(pl.program_id(2) == 0)
    def _():
        if has_bias:
            acc_ref[...] = jnp.broadcast_to(bias_ref[...], acc_ref.shape)
        else:
            acc_ref[...] = jnp.zeros_like(acc_ref)

    for t, off in enumerate(taps):
        acc_ref[...] += jnp.dot(x_ref[0, off:off + rows, :], w_ref[t],
                                preferred_element_type=jnp.float32)

    @pl.when(pl.program_id(2) == pl.num_programs(2) - 1)
    def _():
        o_ref[0] = acc_ref[...].astype(o_ref.dtype)


def conv3x3_direct(x, w, b=None, padding=1, dilation=1, out_dtype=jnp.bfloat16):
    O, C, kh, kw = w.shape
    N, H, W, _ = x.shape
    Hp = H + 2 * padding
    Wp = _rup(W + 2 * padding, 8)            # sublane-aligned tap row stride
    Ho = Hp - dilation * (kh - 1)
    Wo = (W + 2 * padding) - dilation * (kw - 1)
    rows = Ho * Wp
    L = (Hp + 1) * Wp                        # +1 row so the last tap stays in bounds

    tci = _pick_div(C, (512, 256, 128))
    # Full output-channel tile when the (double-buffered) weight block fits,
    # so the full-spatial x block is DMA'd only once per (n, c) step.
    tco = O if kh * kw * tci * O * 2 * 2 <= (8 << 20) else _pick_div(O, (256, 128))

    est = (2 * (L * tci + kh * kw * tci * tco + rows * tco) * 2
           + rows * tco * 4)
    if est > _DCONV_VMEM_BUDGET:
        # TODO(synk): add a spatial row-block grid axis (with tap halo) so the
        # shifted-row GEMM stays within v7x's 64 MiB VMEM at large resolutions.
        return conv2d_im2col(x, w, b, 1, padding, dilation, out_dtype)

    xp = jnp.pad(x.astype(jnp.bfloat16),
                 ((0, 0), (padding, padding + 1),
                  (padding, Wp - W - padding), (0, 0)))
    xf = xp.reshape(N, L, C)
    wt = jnp.transpose(w, (2, 3, 1, 0)).reshape(kh * kw, C, O).astype(jnp.bfloat16)
    taps = tuple(ki * dilation * Wp + kj * dilation
                 for ki in range(kh) for kj in range(kw))

    in_specs = [pl.BlockSpec((1, L, tci), lambda n, o, c: (n, 0, c)),
                pl.BlockSpec((kh * kw, tci, tco), lambda n, o, c: (0, c, o))]
    args = [xf, wt]
    if b is not None:
        in_specs.append(pl.BlockSpec((1, tco), lambda n, o, c: (0, o)))
        args.append(b.reshape(1, O).astype(jnp.float32))

    out = pl.pallas_call(
        functools.partial(_dconv_kernel, taps=taps, rows=rows,
                          has_bias=b is not None),
        out_shape=jax.ShapeDtypeStruct((N, rows, O), out_dtype),
        grid_spec=pltpu.PrefetchScalarGridSpec(
            num_scalar_prefetch=0,
            grid=(N, O // tco, C // tci),
            in_specs=in_specs,
            out_specs=pl.BlockSpec((1, rows, tco), lambda n, o, c: (n, 0, o)),
            scratch_shapes=[pltpu.VMEM((rows, tco), jnp.float32)]),
        compiler_params=pltpu.CompilerParams(
            dimension_semantics=("parallel", "parallel", "arbitrary"),
            vmem_limit_bytes=32 << 20),
    )(*args)
    return out.reshape(N, Ho, Wp, O)[:, :, :Wo, :]


def _im2col(x, kh, kw, stride, padding, dilation):
    N, H, W, C = x.shape
    xp = jnp.pad(x, ((0, 0), (padding, padding), (padding, padding), (0, 0)))
    Ho = (H + 2 * padding - dilation * (kh - 1) - 1) // stride + 1
    Wo = (W + 2 * padding - dilation * (kw - 1) - 1) // stride + 1
    patches = []
    for i in range(kh):
        for j in range(kw):
            sl = xp[:, i * dilation: i * dilation + (Ho - 1) * stride + 1: stride,
                       j * dilation: j * dilation + (Wo - 1) * stride + 1: stride, :]
            patches.append(sl)
    cols = jnp.concatenate(patches, axis=-1)
    return cols.reshape(N * Ho * Wo, kh * kw * C), (N, Ho, Wo)


def conv2d_im2col(x, w, b=None, stride=1, padding=0, dilation=1,
                  out_dtype=jnp.bfloat16):
    O, I, kh, kw = w.shape
    cols, (N, Ho, Wo) = _im2col(x.astype(jnp.bfloat16), kh, kw,
                                stride, padding, dilation)
    wm = jnp.transpose(w, (2, 3, 1, 0)).reshape(kh * kw * I, O)
    out = pallas_matmul(cols, wm, bias=b, out_dtype=out_dtype)
    return out.reshape(N, Ho, Wo, O)


def conv3x3(x, w, b=None, stride=1, padding=1, dilation=1,
            out_dtype=jnp.bfloat16):
    """Dispatcher: shifted-row GEMM for stride-1 maps >= 13 wide, im2col otherwise
    (5x5 / 9x9 maps would waste 29-44% of MXU work on wrap columns)."""
    if stride != 1 or x.shape[2] < 13:
        return conv2d_im2col(x, w, b, stride, padding, dilation, out_dtype)
    return conv3x3_direct(x, w, b, padding, dilation, out_dtype)


def conv1x1(x, w, b=None, stride=1, out_dtype=jnp.bfloat16):
    """1x1 convolution == channel matmul (no im2col)."""
    if stride > 1:
        x = x[:, ::stride, ::stride, :]
    N, H, W, C = x.shape
    O = w.shape[0]
    out = pallas_matmul(x.reshape(-1, C), w.reshape(O, C).T, bias=b,
                        out_dtype=out_dtype)
    return out.reshape(N, H, W, O)


# ----------------------------------------------------------------------------
# Fused BatchNorm kernels (train-mode batch stats, single VMEM block):
#   * stats + affine + activation in ONE kernel (one HBM read, one bf16 write)
#   * bottleneck tail: bn3 stats/affine + downsample-bn stats/affine +
#     residual add + ReLU fused in ONE kernel.
# Zero row-padding is harmless: it does not change sum / sum-of-squares.
# ----------------------------------------------------------------------------

_BN_FUSE_LIMIT = 4 << 20   # f32 bytes of activations held in one block


def _bn_act_fused_kernel(x_ref, g_ref, b_ref, o_ref, *, m_rows, eps, act):
    x = x_ref[...].astype(jnp.float32)
    inv_m = 1.0 / m_rows
    mean = jnp.sum(x, axis=0, keepdims=True) * inv_m
    var = jnp.maximum(jnp.sum(x * x, axis=0, keepdims=True) * inv_m
                      - mean * mean, 0.0)
    scale = g_ref[...] * jax.lax.rsqrt(var + eps)
    y = x * scale + (b_ref[...] - mean * scale)
    if act == "relu":
        y = jnp.maximum(y, 0.0)
    elif act == "leaky_relu":
        y = jnp.where(y >= 0.0, y, 0.01 * y)
    o_ref[...] = y.astype(o_ref.dtype)


def pallas_bn_act_fused(x2d, gamma, beta, act, eps, out_dtype=jnp.bfloat16):
    M, C = x2d.shape
    Mp = _rup(M, 8)
    out = pl.pallas_call(
        functools.partial(_bn_act_fused_kernel, m_rows=M, eps=eps, act=act),
        out_shape=jax.ShapeDtypeStruct((Mp, C), out_dtype),
        grid_spec=pltpu.PrefetchScalarGridSpec(
            num_scalar_prefetch=0,
            grid=(1,),
            in_specs=[pl.BlockSpec((Mp, C), lambda i: (0, 0)),
                      pl.BlockSpec((1, C), lambda i: (0, 0)),
                      pl.BlockSpec((1, C), lambda i: (0, 0))],
            out_specs=pl.BlockSpec((Mp, C), lambda i: (0, 0))),
        compiler_params=pltpu.CompilerParams(
            dimension_semantics=("arbitrary",)),
    )(_pad_rows(x2d, Mp), gamma.reshape(1, C).astype(jnp.float32),
      beta.reshape(1, C).astype(jnp.float32))
    return out[:M] if Mp != M else out


def _bn_tail_fused_kernel(x_ref, gx_ref, bx_ref, r_ref, *rest,
                          m_rows, eps, bn_residual):
    if bn_residual:
        gr_ref, br_ref, o_ref = rest
    else:
        (o_ref,) = rest
    inv_m = 1.0 / m_rows
    x = x_ref[...].astype(jnp.float32)
    mx = jnp.sum(x, axis=0, keepdims=True) * inv_m
    vx = jnp.maximum(jnp.sum(x * x, axis=0, keepdims=True) * inv_m - mx * mx, 0.0)
    sx = gx_ref[...] * jax.lax.rsqrt(vx + eps)
    y = x * sx + (bx_ref[...] - mx * sx)
    r = r_ref[...].astype(jnp.float32)
    if bn_residual:
        mr = jnp.sum(r, axis=0, keepdims=True) * inv_m
        vr = jnp.maximum(jnp.sum(r * r, axis=0, keepdims=True) * inv_m - mr * mr, 0.0)
        sr = gr_ref[...] * jax.lax.rsqrt(vr + eps)
        r = r * sr + (br_ref[...] - mr * sr)
    o_ref[...] = jnp.maximum(y + r, 0.0).astype(o_ref.dtype)


def pallas_bn_tail_fused(x2d, gx, bx, r2d, ds_bn, eps=1e-5,
                         out_dtype=jnp.bfloat16):
    M, C = x2d.shape
    Mp = _rup(M, 8)
    bn_residual = ds_bn is not None
    in_specs = [pl.BlockSpec((Mp, C), lambda i: (0, 0)),
                pl.BlockSpec((1, C), lambda i: (0, 0)),
                pl.BlockSpec((1, C), lambda i: (0, 0)),
                pl.BlockSpec((Mp, C), lambda i: (0, 0))]
    args = [_pad_rows(x2d, Mp), gx.reshape(1, C).astype(jnp.float32),
            bx.reshape(1, C).astype(jnp.float32), _pad_rows(r2d, Mp)]
    if bn_residual:
        gr, br = ds_bn
        in_specs += [pl.BlockSpec((1, C), lambda i: (0, 0)),
                     pl.BlockSpec((1, C), lambda i: (0, 0))]
        args += [gr.reshape(1, C).astype(jnp.float32),
                 br.reshape(1, C).astype(jnp.float32)]
    out = pl.pallas_call(
        functools.partial(_bn_tail_fused_kernel, m_rows=M, eps=eps,
                          bn_residual=bn_residual),
        out_shape=jax.ShapeDtypeStruct((Mp, C), out_dtype),
        grid_spec=pltpu.PrefetchScalarGridSpec(
            num_scalar_prefetch=0,
            grid=(1,),
            in_specs=in_specs,
            out_specs=pl.BlockSpec((Mp, C), lambda i: (0, 0))),
        compiler_params=pltpu.CompilerParams(
            dimension_semantics=("arbitrary",)),
    )(*args)
    return out[:M] if Mp != M else out


# --------- streaming fallbacks (only used when a tensor exceeds the fuse limit)

def _bn_stats_kernel(x_ref, sum_ref, sq_ref):
    @pl.when(pl.program_id(0) == 0)
    def _():
        sum_ref[...] = jnp.zeros_like(sum_ref)
        sq_ref[...] = jnp.zeros_like(sq_ref)
    x = x_ref[...].astype(jnp.float32)
    sum_ref[...] += jnp.sum(x, axis=0, keepdims=True)
    sq_ref[...] += jnp.sum(x * x, axis=0, keepdims=True)


def _affine_act_kernel(x_ref, s_ref, b_ref, o_ref, *, act):
    y = x_ref[...].astype(jnp.float32) * s_ref[...] + b_ref[...]
    if act == "relu":
        y = jnp.maximum(y, 0.0)
    elif act == "leaky_relu":
        y = jnp.where(y >= 0.0, y, 0.01 * y)
    o_ref[...] = y.astype(o_ref.dtype)


def _bn_add_relu_kernel(x_ref, sx_ref, bx_ref, r_ref, sr_ref, br_ref, o_ref):
    x = x_ref[...].astype(jnp.float32) * sx_ref[...] + bx_ref[...]
    r = r_ref[...].astype(jnp.float32) * sr_ref[...] + br_ref[...]
    o_ref[...] = jnp.maximum(x + r, 0.0).astype(o_ref.dtype)


def pallas_bn_stats(x2d):
    M, C = x2d.shape
    tr, Mp = _row_tile(M, C)
    s, ss = pl.pallas_call(
        _bn_stats_kernel,
        out_shape=(jax.ShapeDtypeStruct((1, C), jnp.float32),
                   jax.ShapeDtypeStruct((1, C), jnp.float32)),
        grid_spec=pltpu.PrefetchScalarGridSpec(
            num_scalar_prefetch=0,
            grid=(Mp // tr,),
            in_specs=[pl.BlockSpec((tr, C), lambda i: (i, 0))],
            out_specs=(pl.BlockSpec((1, C), lambda i: (0, 0)),
                       pl.BlockSpec((1, C), lambda i: (0, 0)))),
        compiler_params=pltpu.CompilerParams(dimension_semantics=("arbitrary",)),
    )(_pad_rows(x2d, Mp))
    mean = s[0] / M
    var = jnp.maximum(ss[0] / M - mean * mean, 0.0)
    return mean, var


def bn_scale_shift(x2d, gamma, beta, eps=1e-5):
    mean, var = pallas_bn_stats(x2d)
    scale = gamma * jax.lax.rsqrt(var + eps)
    shift = beta - mean * scale
    return scale, shift


def pallas_affine_act(x2d, scale, shift, act, out_dtype=jnp.bfloat16):
    M, C = x2d.shape
    tr, Mp = _row_tile(M, C)
    out = pl.pallas_call(
        functools.partial(_affine_act_kernel, act=act),
        out_shape=jax.ShapeDtypeStruct((Mp, C), out_dtype),
        grid_spec=pltpu.PrefetchScalarGridSpec(
            num_scalar_prefetch=0,
            grid=(Mp // tr,),
            in_specs=[pl.BlockSpec((tr, C), lambda i: (i, 0)),
                      pl.BlockSpec((1, C), lambda i: (0, 0)),
                      pl.BlockSpec((1, C), lambda i: (0, 0))],
            out_specs=pl.BlockSpec((tr, C), lambda i: (i, 0))),
        compiler_params=pltpu.CompilerParams(dimension_semantics=("parallel",)),
    )(_pad_rows(x2d, Mp), scale.reshape(1, C), shift.reshape(1, C))
    return out[:M] if Mp != M else out


def pallas_bn_add_relu(x2d, sx, bx, r2d, sr, br, out_dtype=jnp.bfloat16):
    M, C = x2d.shape
    tr, Mp = _row_tile(M, C)
    out = pl.pallas_call(
        _bn_add_relu_kernel,
        out_shape=jax.ShapeDtypeStruct((Mp, C), out_dtype),
        grid_spec=pltpu.PrefetchScalarGridSpec(
            num_scalar_prefetch=0,
            grid=(Mp // tr,),
            in_specs=[pl.BlockSpec((tr, C), lambda i: (i, 0)),
                      pl.BlockSpec((1, C), lambda i: (0, 0)),
                      pl.BlockSpec((1, C), lambda i: (0, 0)),
                      pl.BlockSpec((tr, C), lambda i: (i, 0)),
                      pl.BlockSpec((1, C), lambda i: (0, 0)),
                      pl.BlockSpec((1, C), lambda i: (0, 0))],
            out_specs=pl.BlockSpec((tr, C), lambda i: (i, 0))),
        compiler_params=pltpu.CompilerParams(dimension_semantics=("parallel",)),
    )(_pad_rows(x2d, Mp), sx.reshape(1, C), bx.reshape(1, C),
      _pad_rows(r2d, Mp), sr.reshape(1, C), br.reshape(1, C))
    return out[:M] if Mp != M else out


def batch_norm_act(x, gamma, beta, act="none", eps=1e-5):
    """Train-mode BN (batch stats over N,H,W) + fused activation; bf16 output."""
    N, H, W, C = x.shape
    x2 = x.reshape(-1, C)
    M = x2.shape[0]
    if M * C * 4 <= _BN_FUSE_LIMIT:
        y = pallas_bn_act_fused(x2, gamma, beta, act, eps)
    else:
        scale, shift = bn_scale_shift(x2, gamma, beta, eps)
        y = pallas_affine_act(x2, scale, shift, act)
    return y.reshape(N, H, W, C)


# ----------------------------------------------------------------------------
# Pooling / bilinear resize (tiny XLA glue; no meaningful Pallas equivalent)
# ----------------------------------------------------------------------------

def maxpool2d_ceil(x, k=3, s=2, p=1):
    N, H, W, C = x.shape

    def out_dim(d):
        o = -((d + 2 * p - k) // -s) + 1
        if (o - 1) * s >= d + p:
            o -= 1
        return o

    Ho, Wo = out_dim(H), out_dim(W)
    eh = max(0, (Ho - 1) * s + k - (H + 2 * p))
    ew = max(0, (Wo - 1) * s + k - (W + 2 * p))
    xp = jnp.pad(x, ((0, 0), (p, p + eh), (p, p + ew), (0, 0)),
                 constant_values=-jnp.inf)
    out = None
    for i in range(k):
        for j in range(k):
            sl = xp[:, i: i + (Ho - 1) * s + 1: s, j: j + (Wo - 1) * s + 1: s, :]
            out = sl if out is None else jnp.maximum(out, sl)
    return out


def adaptive_avg_pool(x, out_size):
    x = x.astype(jnp.float32)
    N, H, W, C = x.shape
    hb = [(int(math.floor(i * H / out_size)), int(math.ceil((i + 1) * H / out_size)))
          for i in range(out_size)]
    wb = [(int(math.floor(j * W / out_size)), int(math.ceil((j + 1) * W / out_size)))
          for j in range(out_size)]
    rows = []
    for hs, he in hb:
        cols = []
        for ws, we in wb:
            cols.append(jnp.mean(x[:, hs:he, ws:we, :], axis=(1, 2)))
        rows.append(jnp.stack(cols, axis=1))
    return jnp.stack(rows, axis=1)  # (N, out, out, C)


def bilinear_align_corners(x, oh, ow):
    N, H, W, C = x.shape

    def coords(inp, out):
        if inp == 1 or out == 1:
            src = jnp.zeros((out,), jnp.float32)
        else:
            src = jnp.arange(out, dtype=jnp.float32) * ((inp - 1) / (out - 1))
        i0 = jnp.clip(jnp.floor(src).astype(jnp.int32), 0, inp - 1)
        i1 = jnp.minimum(i0 + 1, inp - 1)
        frac = src - i0.astype(jnp.float32)
        return i0, i1, frac

    y0, y1, wy = coords(H, oh)
    x0, x1, wx = coords(W, ow)
    a = x[:, y0][:, :, x0]
    b = x[:, y0][:, :, x1]
    c = x[:, y1][:, :, x0]
    d = x[:, y1][:, :, x1]
    wy = wy[None, :, None, None]
    wx = wx[None, None, :, None]
    top = a * (1.0 - wx) + b * wx
    bot = c * (1.0 - wx) + d * wx
    return top * (1.0 - wy) + bot * wy


# ----------------------------------------------------------------------------
# Parameter construction (kaiming-normal convs, BN gamma=1 / beta=0)
# ----------------------------------------------------------------------------

class KeyGen:
    def __init__(self, key):
        self.key = key

    def __call__(self):
        self.key, sub = jax.random.split(self.key)
        return sub


def kaiming_conv(kg, shape):  # (O, I, kh, kw)
    fan_in = shape[1] * shape[2] * shape[3]
    return jax.random.normal(kg(), shape, dtype=jnp.float32) * jnp.sqrt(2.0 / fan_in)


def uniform_bias(kg, c, fan_in):
    bound = 1.0 / math.sqrt(fan_in)
    return jax.random.uniform(kg(), (c,), jnp.float32, -bound, bound)


def bn_params(c):
    return (jnp.ones((c,), jnp.float32), jnp.zeros((c,), jnp.float32))


def make_bottleneck(kg, inplanes, planes, stride, dilation, downsample):
    p = {
        "conv1_w": kaiming_conv(kg, (planes, inplanes, 1, 1)),
        "bn1": bn_params(planes),
        "conv2_w": kaiming_conv(kg, (planes, planes, 3, 3)),
        "bn2": bn_params(planes),
        "conv3_w": kaiming_conv(kg, (planes * 4, planes, 1, 1)),
        "bn3": bn_params(planes * 4),
        "stride": stride,
        "dilation": dilation,
    }
    if downsample:
        p["ds_w"] = kaiming_conv(kg, (planes * 4, inplanes, 1, 1))
        p["ds_bn"] = bn_params(planes * 4)
    return p


def init_resnet(kg, layers):
    params = {"conv1_w": kaiming_conv(kg, (64, 3, 7, 7)), "bn1": bn_params(64)}
    inplanes = [64]

    def make_layer(planes, blocks, stride=1, dilation=1):
        blks = []
        ds = (stride != 1 or inplanes[0] != planes * 4)
        blks.append(make_bottleneck(kg, inplanes[0], planes, stride, dilation, ds))
        inplanes[0] = planes * 4
        for _ in range(1, blocks):
            blks.append(make_bottleneck(kg, inplanes[0], planes, 1, dilation, False))
        return blks

    params["layer1"] = make_layer(64, layers[0])
    params["layer2"] = make_layer(128, layers[1], stride=2)
    params["layer3"] = make_layer(256, layers[2], stride=2, dilation=1)
    params["layer4"] = make_layer(512, layers[3], stride=1, dilation=2)
    return params


def init_decoder(kg, num_classes):
    p = {}
    p["dsn_conv1_w"] = kaiming_conv(kg, (512, 1024, 3, 3))
    p["dsn_conv1_b"] = uniform_bias(kg, 512, 1024 * 9)
    p["dsn_bn"] = bn_params(512)
    p["dsn_conv2_w"] = kaiming_conv(kg, (num_classes, 512, 1, 1))
    p["dsn_conv2_b"] = uniform_bias(kg, num_classes, 512)
    p["psp"] = [{"size": s,
                 "w": kaiming_conv(kg, (512, 2048, 1, 1)),
                 "bn": bn_params(512)} for s in (1, 2, 3, 6)]
    p["psp_bottleneck_w"] = kaiming_conv(kg, (512, 2048 + 4 * 512, 3, 3))
    p["psp_bottleneck_bn"] = bn_params(512)
    p["l6_conv1_w"] = kaiming_conv(kg, (256, 512, 3, 3))
    p["l6_bn"] = bn_params(256)
    p["l6_conv2_w"] = kaiming_conv(kg, (num_classes, 256, 1, 1))
    p["l6_conv2_b"] = uniform_bias(kg, num_classes, 256)
    return p


# ----------------------------------------------------------------------------
# Forward passes
# ----------------------------------------------------------------------------

def bottleneck_fwd(p, x):
    out = conv1x1(x, p["conv1_w"])
    out = batch_norm_act(out, *p["bn1"], act="relu")
    out = conv3x3(out, p["conv2_w"], stride=p["stride"],
                  padding=p["dilation"], dilation=p["dilation"])
    out = batch_norm_act(out, *p["bn2"], act="relu")
    out3 = conv1x1(out, p["conv3_w"])
    N, H, W, C = out3.shape
    if "ds_w" in p:
        res = conv1x1(x, p["ds_w"], stride=p["stride"])
        ds_bn = p["ds_bn"]
    else:
        res = x
        ds_bn = None
    x2 = out3.reshape(-1, C)
    r2 = res.reshape(-1, C)
    M = x2.shape[0]
    if 2 * M * C * 4 <= _BN_FUSE_LIMIT:
        # one kernel: bn3 stats/affine (+ downsample bn stats/affine) + add + relu
        y = pallas_bn_tail_fused(x2, *p["bn3"], r2, ds_bn)
    else:
        s3, b3 = bn_scale_shift(x2, *p["bn3"])
        if ds_bn is not None:
            sr, br = bn_scale_shift(r2, *ds_bn)
        else:
            sr = jnp.ones((C,), jnp.float32)
            br = jnp.zeros((C,), jnp.float32)
        y = pallas_bn_add_relu(x2, s3, b3, r2, sr, br)
    return y.reshape(N, H, W, C)


def resnet_fwd(p, x):
    x = conv2d_im2col(x, p["conv1_w"], stride=2, padding=3)
    x = batch_norm_act(x, *p["bn1"], act="relu")
    x1 = maxpool2d_ceil(x)
    feats = []
    cur = x1
    for name in ("layer1", "layer2", "layer3", "layer4"):
        for blk in p[name]:
            cur = bottleneck_fwd(blk, cur)
        feats.append(cur)
    return feats  # [x2, x3, x4, x5]


def psp_fwd(p, feats):
    N, H, W, C = feats.shape
    priors = []
    for br in p["psp"]:
        pooled = adaptive_avg_pool(feats, br["size"])
        y = conv1x1(pooled, br["w"])
        y = batch_norm_act(y, *br["bn"], act="leaky_relu")  # InPlaceABNSync default
        priors.append(bilinear_align_corners(y, H, W).astype(jnp.bfloat16))
    # single bf16 channel concat + one conv (avoids 4 f32 partial-sum round trips)
    cat = jnp.concatenate(priors + [feats.astype(jnp.bfloat16)], axis=-1)
    out = conv3x3(cat, p["psp_bottleneck_w"], padding=1)
    return batch_norm_act(out, *p["psp_bottleneck_bn"], act="relu")


def decoder_fwd(p, feats):
    x_dsn = conv3x3(feats[-2], p["dsn_conv1_w"], b=p["dsn_conv1_b"], padding=1)
    x_dsn = batch_norm_act(x_dsn, *p["dsn_bn"], act="relu")
    x_dsn = conv1x1(x_dsn, p["dsn_conv2_w"], b=p["dsn_conv2_b"],
                    out_dtype=jnp.float32)

    x_seg = psp_fwd(p, feats[-1])
    x_seg = conv3x3(x_seg, p["l6_conv1_w"], padding=1)
    x_seg = batch_norm_act(x_seg, *p["l6_bn"], act="relu")
    x_seg = conv1x1(x_seg, p["l6_conv2_w"], b=p["l6_conv2_b"],
                    out_dtype=jnp.float32)
    return [x_seg, x_dsn]


def network_forward(params, x_nchw):
    x = jnp.transpose(x_nchw, (0, 2, 3, 1)).astype(jnp.float32)  # NCHW -> NHWC
    feats = resnet_fwd(params["encoder"], x)
    x_seg, x_dsn = decoder_fwd(params["decoder"], feats)
    return [jnp.transpose(x_seg, (0, 3, 1, 2)),
            jnp.transpose(x_dsn, (0, 3, 1, 2))]  # back to NCHW


# ----------------------------------------------------------------------------

if __name__ == "__main__":
    root = jax.random.PRNGKey(0)
    pkey, xkey = jax.random.split(root)

    num_classes = 7
    layers = [1, 1, 1, 1]  # small depth; the 64..2048 channel structure is fixed
    kg = KeyGen(pkey)
    params = {"encoder": init_resnet(kg, layers),
              "decoder": init_decoder(kg, num_classes)}

    x = jax.random.normal(xkey, (2, 3, 64, 64), dtype=jnp.float32)

    x_seg, x_dsn = network_forward(params, x)
    jax.block_until_ready((x_seg, x_dsn))

    # 64x64 input -> 32 (stem) -> 17 (maxpool) -> 17 (layer1) -> 9 (layer2)
    # -> 5 (layer3, stride 2) -> 5 (layer4, stride 1 / dilation 2)
    assert x_seg.shape == (2, num_classes, 5, 5), x_seg.shape
    assert x_dsn.shape == (2, num_classes, 5, 5), x_dsn.shape
    assert bool(jnp.all(jnp.isfinite(x_seg))) and bool(jnp.all(jnp.isfinite(x_dsn)))
    print("KERNEL_OK")
</pallas_src>

<mosaic_0001>
module attributes {stable_mosaic.version = 11 : i64} {
  func.func @_matmul_kernel(%arg0: i32, %arg1: i32, %arg2: i32, %arg3: memref<256x256xbf16, #tpu.memory_space<vmem>>, %arg4: memref<256x128xbf16, #tpu.memory_space<vmem>>, %arg5: memref<1x128xf32, #tpu.memory_space<vmem>>, %arg6: memref<256x128xbf16, #tpu.memory_space<vmem>>, %arg7: memref<256x128xf32, #tpu.memory_space<vmem>>) attributes {dimension_semantics = [#tpu.dimension_semantics<parallel>, #tpu.dimension_semantics<parallel>, #tpu.dimension_semantics<arbitrary>], iteration_bounds = array<i64: 8, 1, 1>, scalar_prefetch = 0 : i64, scratch_operands = 1 : i64, tpu.core_type = #tpu.core_type<tc>, window_params = [{transform_indices = @transform_0, window_bounds = array<i64: 256, 256>}, {transform_indices = @transform_1, window_bounds = array<i64: 256, 128>}, {transform_indices = @transform_2, window_bounds = array<i64: 1, 128>}, {transform_indices = @transform_3, window_bounds = array<i64: 256, 128>}]} {
    %c0_i32 = arith.constant 0 : i32
    %0 = arith.cmpi eq, %arg2, %c0_i32 : i32
    %1 = arith.extui %0 : i1 to i32
    %c0_i32_0 = arith.constant 0 : i32
    %2 = arith.cmpi ne, %1, %c0_i32_0 : i32
    scf.if %2 {
      %c0_10 = arith.constant 0 : index
      %c0_11 = arith.constant 0 : index
      %12 = vector.load %arg5[%c0_10, %c0_11] : memref<1x128xf32, #tpu.memory_space<vmem>>, vector<1x128xf32>
      %13 = vector.shape_cast %12 : vector<1x128xf32> to vector<1x128xf32>
      %14 = vector.broadcast %13 : vector<1x128xf32> to vector<256x128xf32>
      %c0_12 = arith.constant 0 : index
      %c0_13 = arith.constant 0 : index
      %15 = vector.load %arg7[%c0_12, %c0_13] : memref<256x128xf32, #tpu.memory_space<vmem>>, vector<256x128xf32>
      tpu.vector_store %arg7[%c0_12, %c0_13], %14 {strides = array<i32>} : memref<256x128xf32, #tpu.memory_space<vmem>>, vector<256x128xf32>,
    } else {
    }
    %c0 = arith.constant 0 : index
    %c0_1 = arith.constant 0 : index
    %3 = vector.load %arg7[%c0, %c0_1] : memref<256x128xf32, #tpu.memory_space<vmem>>, vector<256x128xf32>
    %c0_2 = arith.constant 0 : index
    %c0_3 = arith.constant 0 : index
    %4 = vector.load %arg3[%c0_2, %c0_3] : memref<256x256xbf16, #tpu.memory_space<vmem>>, vector<256x256xbf16>
    %c0_4 = arith.constant 0 : index
    %c0_5 = arith.constant 0 : index
    %5 = vector.load %arg4[%c0_4, %c0_5] : memref<256x128xbf16, #tpu.memory_space<vmem>>, vector<256x128xbf16>
    %cst = arith.constant dense<0.000000e+00> : vector<256x128xf32>
    %6 = tpu.matmul %4, %5, %cst {dimension_numbers = #tpu.dot_dimension_numbers<[1], [0], [0], [1], [0, 0, 1, 1], [], []>} : vector<256x256xbf16>, vector<256x128xbf16>, vector<256x128xf32> -> vector<256x128xf32>
    %7 = arith.addf %3, %6 : vector<256x128xf32>
    %c0_6 = arith.constant 0 : index
    %c0_7 = arith.constant 0 : index
    %8 = vector.load %arg7[%c0_6, %c0_7] : memref<256x128xf32, #tpu.memory_space<vmem>>, vector<256x128xf32>
    tpu.vector_store %arg7[%c0_6, %c0_7], %7 {strides = array<i32>} : memref<256x128xf32, #tpu.memory_space<vmem>>, vector<256x128xf32>,
    %c0_i32_8 = arith.constant 0 : i32
    %9 = arith.cmpi eq, %arg2, %c0_i32_8 : i32
    %10 = arith.extui %9 : i1 to i32
    %c0_i32_9 = arith.constant 0 : i32
    %11 = arith.cmpi ne, %10, %c0_i32_9 : i32
    scf.if %11 {
      %c0_10 = arith.constant 0 : index
      %c0_11 = arith.constant 0 : index
      %12 = vector.load %arg7[%c0_10, %c0_11] : memref<256x128xf32, #tpu.memory_space<vmem>>, vector<256x128xf32>
      %13 = arith.truncf %12 : vector<256x128xf32> to vector<256x128xbf16>
      %c0_12 = arith.constant 0 : index
      %c0_13 = arith.constant 0 : index
      %14 = vector.load %arg6[%c0_12, %c0_13] : memref<256x128xbf16, #tpu.memory_space<vmem>>, vector<256x128xbf16>
      tpu.vector_store %arg6[%c0_12, %c0_13], %13 {strides = array<i32>} : memref<256x128xbf16, #tpu.memory_space<vmem>>, vector<256x128xbf16>,
    } else {
    }
    return
  }
  func.func @transform_0(%arg0: i32, %arg1: i32, %arg2: i32) -> (i32, i32) {
    %c0_i32 = arith.constant 0 : i32
    return %arg0, %arg2 : i32, i32
  }
  func.func @transform_1(%arg0: i32, %arg1: i32, %arg2: i32) -> (i32, i32) {
    %c0_i32 = arith.constant 0 : i32
    return %arg2, %arg1 : i32, i32
  }
  func.func @transform_2(%arg0: i32, %arg1: i32, %arg2: i32) -> (i32, i32) {
    %c0_i32 = arith.constant 0 : i32
    %c0_i32_0 = arith.constant 0 : i32
    return %c0_i32, %arg1 : i32, i32
  }
  func.func @transform_3(%arg0: i32, %arg1: i32, %arg2: i32) -> (i32, i32) {
    %c0_i32 = arith.constant 0 : i32
    return %arg0, %arg1 : i32, i32
  }
}

</mosaic_0001>

<llo_original>
// kernel: tpu_custom_call.1
$region0: #{tpu_custom_call.1}
  #allocation0 [shape = 'u32[]', space=smem, size = 0x4, offset = 0x4, fixed_abs, tag = 'smem constant byte address 0x4 - core index']
  #allocation1 [shape = 'u32[144,128]{1,0:T(1,128)}', space=vmem, size = 0x12000, scoped, tag = 'internal scratch']
  #allocation2 [shape = 'f32[256,128]{1,0:T(8,128)}', space=vmem, size = 0x20000, scoped, tag = 'scratch operand']
  %s0 = inlined_call_operand.hbm [shape: bf16[2048,256], index: 0, kind: input, shape index: {}]
  %s1 = inlined_call_operand.hbm [shape: bf16[256,128], index: 1, kind: input, shape index: {}]
  %s2 = inlined_call_operand.vmem [shape: f32[1,128], index: 2, kind: input, shape index: {}]
  %s3 = inlined_call_operand.hbm [shape: bf16[2048,128], index: 3, kind: output, shape index: {}]
  %s4 = sld [smem:[#allocation0]]
  $region61: #{tpu_custom_call.1} parent=0
    _
  %s6 = ssub.s32 1, %s4
  %s7 = scalar_select 0, %s6, %s4
  $region1: #{tpu_custom_call.1} parent=0
    #allocation3 [shape = 'u8[262144]{0}', space=vmem, size = 0x40000, scoped, tag = 'input window, operand 0']
    #allocation4 [shape = 's32[2]{0}', space=sflag, size = 0x8, scoped, tag = 'scoped memory for tpu_custom_call.1']
    #allocation5 [shape = 's32[2]{0}', space=sflag, size = 0x8, scoped, tag = 'scoped memory for tpu_custom_call.1']
    #allocation6 [shape = 'u8[65536]{0}', space=vmem, size = 0x10000, scoped, tag = 'input window, operand 1, single buffered']
    #allocation7 [shape = 's32[1]{0}', space=sflag, size = 0x4, scoped, tag = 'scoped memory for tpu_custom_call.1']
    #allocation8 [shape = 'u8[131072]{0}', space=vmem, size = 0x20000, scoped, tag = 'output window, operand 0']
    %8 = vsyncpa [#allocation4], 0
    %s9 = scalar_lea.sflag [#allocation4], 1
    %10 = vsyncpa %s9, 0
    %11 = vsyncpa [#allocation7], 0
    %12 = vsyncpa [#allocation5], 0
    %s13 = scalar_lea.sflag [#allocation5], 1
    %14 = vsyncpa %s13, 0
    loop: start=0, step=1, limit=10
    $region2: #{tpu_custom_call.1} parent=1 // loop_pre_header
      _
    $region3: #{tpu_custom_call.1} parent=1 // loop_header
      %s16 = sphi 0, %s20
      %p17 = scmp.ge.s32.totalorder %s16, 10
      %s23 = sphi 0, %s42
      %s24 = sphi 0, %s38
      %s25 = sphi 0, %s34
      %s26 = sphi 0, %s23
      %s27 = sphi 0, %s24
      %s28 = sphi 0, %s25
      %s29 = sphi 0, %s26
      %s30 = sphi 0, %s27
      %s31 = sphi 0, %s28
      %s47 = sphi 0, %s49
      %s50 = sphi 0, %s47
      %s51 = sphi 0, %s50
      %s67 = sphi 0, %s51
      %s75 = sphi 0, %s77
      %s78 = sphi 0, %s75
      %s79 = sphi 0, %s78
      %s95 = sphi 0, %s79
      %s101 = sphi 0, %s103
      %s104 = sphi 0, %s101
      %s105 = sphi 0, %s104
      %s121 = sphi 0, %s105
      %s129 = sphi 0, %s131
      %s132 = sphi 0, %s129
      %s133 = sphi 0, %s132
      %s149 = sphi 0, %s133
    $region4: #{tpu_custom_call.1} parent=1 // loop_header_branch
      %19 = sbr.rel (%p17) target = $region8
    $region5: #{tpu_custom_call.1} parent=1 // loop_body
      %s21 = ssub.s32 %s16, 1
      %s22 = ssub.s32 %s16, 2
      %s32 = sadd.s32 1, %s25
      %p33 = scmp.ge.s32.totalorder %s32, 1
      %s34 = scalar_select %p33, 0, %s32
      %s35 = sadd.s32 1, %s24
      %s36 = scalar_select %p33, %s35, %s24
      %p37 = scmp.ge.s32.totalorder %s36, 1
      %s38 = scalar_select %p37, 0, %s36
      %s39 = sadd.s32 1, %s23
      %s40 = scalar_select %p37, %s39, %s23
      %p41 = scmp.ge.s32.totalorder %s40, 8
      %s42 = scalar_select %p41, 0, %s40
      %s43 = ssub.s32 %s23, %s42
      %s44 = ssub.s32 %s25, %s34
      %s45 = sor.u32 %s43, %s44
      %p46 = scmp.eq.s32.totalorder %s45, 0
      %s48 = sadd.s32 %s47, 1
      %s49 = scalar_select %p46, %s47, %s48
      %p52 = pneg %p46
      %p53 = scmp.eq.s32.totalorder %s16, 7
      %p54 = por %p52, %p53
      %p55 = scmp.ne.s32.totalorder %s47, %s50
      %p56 = scmp.eq.s32.totalorder %s16, 0
      %p57 = por %p55, %p56
      %p58 = scmp.ne.s32.totalorder %s47, %s50
      %p59 = scmp.eq.s32.totalorder %s21, 7
      %p60 = por %p58, %p59
      %p61 = scmp.ne.s32.totalorder %s50, %s51
      %p62 = scmp.eq.s32.totalorder %s21, 0
      %p63 = por %p61, %p62
      %p64 = scmp.ne.s32.totalorder %s50, %s51
      %p65 = scmp.eq.s32.totalorder %s22, 7
      %p66 = por %p64, %p65
      %p68 = scmp.ne.s32.totalorder %s51, %s67
      %p69 = scmp.eq.s32.totalorder %s22, 0
      %p70 = por %p68, %p69
      %s71 = ssub.s32 %s25, %s34
      %s72 = ssub.s32 %s24, %s38
      %s73 = sor.u32 %s71, %s72
      %p74 = scmp.eq.s32.totalorder %s73, 0
      %s76 = sadd.s32 %s75, 1
      %s77 = scalar_select %p74, %s75, %s76
      %p80 = pneg %p74
      %p81 = scmp.eq.s32.totalorder %s16, 7
      %p82 = por %p80, %p81
      %p83 = scmp.ne.s32.totalorder %s75, %s78
      %p84 = scmp.eq.s32.totalorder %s16, 0
      %p85 = por %p83, %p84
      %p86 = scmp.ne.s32.totalorder %s75, %s78
      %p87 = scmp.eq.s32.totalorder %s21, 7
      %p88 = por %p86, %p87
      %p89 = scmp.ne.s32.totalorder %s78, %s79
      %p90 = scmp.eq.s32.totalorder %s21, 0
      %p91 = por %p89, %p90
      %p92 = scmp.ne.s32.totalorder %s78, %s79
      %p93 = scmp.eq.s32.totalorder %s22, 7
      %p94 = por %p92, %p93
      %p96 = scmp.ne.s32.totalorder %s79, %s95
      %p97 = scmp.eq.s32.totalorder %s22, 0
      %p98 = por %p96, %p97
      %s99 = ssub.s32 %s24, %s38
      %p100 = scmp.eq.s32.totalorder %s99, 0
      %s102 = sadd.s32 %s101, 1
      %s103 = scalar_select %p100, %s101, %s102
      %p106 = pneg %p100
      %p107 = scmp.eq.s32.totalorder %s16, 7
      %p108 = por %p106, %p107
      %p109 = scmp.ne.s32.totalorder %s101, %s104
      %p110 = scmp.eq.s32.totalorder %s16, 0
      %p111 = por %p109, %p110
      %p112 = scmp.ne.s32.totalorder %s101, %s104
      %p113 = scmp.eq.s32.totalorder %s21, 7
      %p114 = por %p112, %p113
      %p115 = scmp.ne.s32.totalorder %s104, %s105
      %p116 = scmp.eq.s32.totalorder %s21, 0
      %p117 = por %p115, %p116
      %p118 = scmp.ne.s32.totalorder %s104, %s105
      %p119 = scmp.eq.s32.totalorder %s22, 7
      %p120 = por %p118, %p119
      %p122 = scmp.ne.s32.totalorder %s105, %s121
      %p123 = scmp.eq.s32.totalorder %s22, 0
      %p124 = por %p122, %p123
      %s125 = ssub.s32 %s23, %s42
      %s126 = ssub.s32 %s24, %s38
      %s127 = sor.u32 %s125, %s126
      %p128 = scmp.eq.s32.totalorder %s127, 0
      %s130 = sadd.s32 %s129, 1
      %s131 = scalar_select %p128, %s129, %s130
      %p134 = pneg %p128
      %p135 = scmp.eq.s32.totalorder %s16, 7
      %p136 = por %p134, %p135
      %p137 = scmp.ne.s32.totalorder %s129, %s132
      %p138 = scmp.eq.s32.totalorder %s16, 0
      %p139 = por %p137, %p138
      %p140 = scmp.ne.s32.totalorder %s129, %s132
      %p141 = scmp.eq.s32.totalorder %s21, 7
      %p142 = por %p140, %p141
      %p143 = scmp.ne.s32.totalorder %s132, %s133
      %p144 = scmp.eq.s32.totalorder %s21, 0
      %p145 = por %p143, %p144
      %p146 = scmp.ne.s32.totalorder %s132, %s133
      %p147 = scmp.eq.s32.totalorder %s22, 7
      %p148 = por %p146, %p147
      %p150 = scmp.ne.s32.totalorder %s133, %s149
      %p151 = scmp.eq.s32.totalorder %s22, 0
      %p152 = por %p150, %p151
      %p153 = scmp.le.s32.totalorder 1, %s16
      %p154 = scmp.lt.s32.totalorder %s16, 9
      %p155 = pnand %p153, %p154
      %p156 = pneg %p155
      // Predicated region
      $region9: #{tpu_custom_call.1} parent=5 // pred_check
        _
      $region10: #{tpu_custom_call.1} parent=5 // pred_check_branch
        %158 = sbr.rel (%p155) target = $region12
      $region11: #{tpu_custom_call.1} parent=5 // pred_region
        %s159 = ssub.s32 %s16, 1
        // Predicated region
        $region13: #{tpu_custom_call.1} parent=11 // pred_check
          %p160 = pneg %p91
        $region14: #{tpu_custom_call.1} parent=11 // pred_check_branch
          %162 = sbr.rel (%p160) target = $region16
        $region15: #{tpu_custom_call.1} parent=11 // pred_region
          %s163 = smul.u32 32, %s28
          %s165 = ssub.s32 2048, 2048
          %166 = vsyncadd [#allocation7], %s165
          %s167 = sadd.s32 %s27, %s163
          %s168 = smul.addr %s167, 64
          %s169 = scalar_lea.hbm %s1, %s168
          %s170 = sshll.u32 [#allocation6], 4
          %s171 = int_to_ptr.vmem [resolvable:$true] %s170
          %176 = dma.hbm_to_vmem [thread:$0]  %s169, 2048, %s171, [#allocation7], 64, 64, 4
        $region16: #{tpu_custom_call.1} parent=11 // pred_fallthru
          _
        // Predicated region
        $region17: #{tpu_custom_call.1} parent=11 // pred_check
          %p177 = pneg %p117
        $region18: #{tpu_custom_call.1} parent=11 // pred_check_branch
          %179 = sbr.rel (%p177) target = $region20
        $region19: #{tpu_custom_call.1} parent=11 // pred_region
          %p180 = scmp.lt.s32.totalorder %s27, 0
          %s181 = scalar_select %p180, %s27, 0
          %s182 = scalar_lea.vmem %s2, %s181
        $region20: #{tpu_custom_call.1} parent=11 // pred_fallthru
          _
      $region12: #{tpu_custom_call.1} parent=5 // pred_fallthru
        _
      %p183 = scmp.lt.s32.totalorder %s16, 8
      // Predicated region
      $region21: #{tpu_custom_call.1} parent=5 // pred_check
        %p184 = pneg %p183
      $region22: #{tpu_custom_call.1} parent=5 // pred_check_branch
        %186 = sbr.rel (%p184) target = $region24
      $region23: #{tpu_custom_call.1} parent=5 // pred_region
        // Predicated region
        $region25: #{tpu_custom_call.1} parent=23 // pred_check
          %p187 = pneg %p57
        $region26: #{tpu_custom_call.1} parent=23 // pred_check_branch
          %189 = sbr.rel (%p187) target = $region28
        $region27: #{tpu_custom_call.1} parent=23 // pred_region
          %s190 = sand.u32 %s47, 1
          %s191 = scalar_lea.sflag [#allocation4], %s190
          %s192 = sand.u32 %s47, 1
          %s193 = smul.addr %s192, 256
          %s194 = scalar_lea.vmem [#allocation3], %s193
          %s195 = smul.u32 32, %s23
          %s196 = smul.u32 2, %s25
          %s198 = ssub.s32 4096, 4096
          %199 = vsyncadd %s191, %s198
          %s200 = smul.addr %s195, 2
          %s201 = sadd.s32 %s196, %s200
          %s202 = smul.addr %s201, 64
          %s203 = scalar_lea.hbm %s0, %s202
          %s204 = sshll.u32 %s194, 4
          %s205 = int_to_ptr.vmem [resolvable:$true] %s204
          %210 = dma.hbm_to_vmem [thread:$0]  %s203, 4096, %s205, %s191, 128, 128, 8
        $region28: #{tpu_custom_call.1} parent=23 // pred_fallthru
          _
      $region24: #{tpu_custom_call.1} parent=5 // pred_fallthru
        _
      %p211 = scmp.le.s32.totalorder 1, %s16
      %p212 = scmp.lt.s32.totalorder %s16, 9
      %p213 = pnand %p211, %p212
      %p214 = pneg %p213
      // Predicated region
      $region29: #{tpu_custom_call.1} parent=5 // pred_check
        _
      $region30: #{tpu_custom_call.1} parent=5 // pred_check_branch
        %216 = sbr.rel (%p213) target = $region32
      $region31: #{tpu_custom_call.1} parent=5 // pred_region
        %s217 = ssub.s32 %s16, 1
        %s218 = sand.u32 %s50, 1
        %s219 = scalar_lea.sflag [#allocation4], %s218
        %s220 = sand.u32 %s50, 1
        %s221 = smul.addr %s220, 256
        %s222 = scalar_lea.vmem [#allocation3], %s221
        // Predicated region
        $region33: #{tpu_custom_call.1} parent=31 // pred_check
          %p223 = pneg %p63
        $region34: #{tpu_custom_call.1} parent=31 // pred_check_branch
          %225 = sbr.rel (%p223) target = $region36
        $region35: #{tpu_custom_call.1} parent=31 // pred_region
          %226 = dma.done %s219, 4096
        $region36: #{tpu_custom_call.1} parent=31 // pred_fallthru
          _
        // Predicated region
        $region37: #{tpu_custom_call.1} parent=31 // pred_check
          %p227 = pneg %p91
        $region38: #{tpu_custom_call.1} parent=31 // pred_check_branch
          %229 = sbr.rel (%p227) target = $region40
        $region39: #{tpu_custom_call.1} parent=31 // pred_region
          %230 = dma.done [#allocation7], 2048
        $region40: #{tpu_custom_call.1} parent=31 // pred_fallthru
          _
        %s231 = sand.u32 %s50, 1
        %s232 = scalar_lea.sflag [#allocation4], %s231
        %s233 = sand.u32 %s50, 1
        %s234 = smul.addr %s233, 256
        %s235 = scalar_lea.vmem [#allocation3], %s234
        %p236 = pneg %p63
        %p237 = pneg %p60
        %p238 = pneg %p91
        %p239 = pneg %p88
        %p240 = scmp.lt.s32.totalorder %s27, 0
        %s241 = scalar_select %p240, %s27, 0
        %s242 = scalar_lea.vmem %s2, %s241
        %p243 = pneg %p117
        %p244 = pneg %p114
        %p245 = pneg %p145
        %p246 = pneg %p142
        %s247 = sand.u32 %s132, 1
        %s248 = scalar_lea.sflag [#allocation5], %s247
        %s249 = sand.u32 %s132, 1
        %s250 = smul.addr %s249, 128
        %s251 = scalar_lea.vmem [#allocation8], %s250
        %s252 = smul.u32 32, %s26
        %s253 = smul.u32 2, %s28
        %s254 = smul.u32 32, %s28
        %p255 = scmp.lt.s32.totalorder %s27, 0
        %s256 = scalar_select %p255, %s27, 0
        %s257 = scalar_lea.vmem %s2, %s256
        %s258 = smul.u32 32, %s26
        %p260 = scmp.eq.s32.totalorder %s28, 0
        // Predicated region
        $region41: #{tpu_custom_call.1} parent=31 // pred_check
          %p261 = pneg %p260
        $region42: #{tpu_custom_call.1} parent=31 // pred_check_branch
          %263 = sbr.rel (%p261) target = $region44
        $region43: #{tpu_custom_call.1} parent=31 // pred_region
          %v264 = vld [vmem:[%s257] sm:$0x1]
          %v266 = vlaneseq
          %v267 = vshrl.u32 %v266, 7
          %v268 = vsub.s32 0, %v267
          %v269 = vrot.slane %v264, %v268
          %271 = vst [vmem:[#allocation2] sm:$0xff] %v269
          %272 = vst [vmem:[#allocation2 + $0x8] sm:$0xff] %v269
          %273 = vst [vmem:[#allocation2 + $0x10] sm:$0xff] %v269
          %274 = vst [vmem:[#allocation2 + $0x18] sm:$0xff] %v269
          %275 = vst [vmem:[#allocation2 + $0x20] sm:$0xff] %v269
          %276 = vst [vmem:[#allocation2 + $0x28] sm:$0xff] %v269
          %277 = vst [vmem:[#allocation2 + $0x30] sm:$0xff] %v269
          %278 = vst [vmem:[#allocation2 + $0x38] sm:$0xff] %v269
          %279 = vst [vmem:[#allocation2 + $0x40] sm:$0xff] %v269
          %280 = vst [vmem:[#allocation2 + $0x48] sm:$0xff] %v269
          %281 = vst [vmem:[#allocation2 + $0x50] sm:$0xff] %v269
          %282 = vst [vmem:[#allocation2 + $0x58] sm:$0xff] %v269
          %283 = vst [vmem:[#allocation2 + $0x60] sm:$0xff] %v269
          %284 = vst [vmem:[#allocation2 + $0x68] sm:$0xff] %v269
          %285 = vst [vmem:[#allocation2 + $0x70] sm:$0xff] %v269
          %286 = vst [vmem:[#allocation2 + $0x78] sm:$0xff] %v269
          %287 = vst [vmem:[#allocation2 + $0x80] sm:$0xff] %v269
          %288 = vst [vmem:[#allocation2 + $0x88] sm:$0xff] %v269
          %289 = vst [vmem:[#allocation2 + $0x90] sm:$0xff] %v269
          %290 = vst [vmem:[#allocation2 + $0x98] sm:$0xff] %v269
          %291 = vst [vmem:[#allocation2 + $0xa0] sm:$0xff] %v269
          %292 = vst [vmem:[#allocation2 + $0xa8] sm:$0xff] %v269
          %293 = vst [vmem:[#allocation2 + $0xb0] sm:$0xff] %v269
          %294 = vst [vmem:[#allocation2 + $0xb8] sm:$0xff] %v269
          %295 = vst [vmem:[#allocation2 + $0xc0] sm:$0xff] %v269
          %296 = vst [vmem:[#allocation2 + $0xc8] sm:$0xff] %v269
          %297 = vst [vmem:[#allocation2 + $0xd0] sm:$0xff] %v269
          %298 = vst [vmem:[#allocation2 + $0xd8] sm:$0xff] %v269
          %299 = vst [vmem:[#allocation2 + $0xe0] sm:$0xff] %v269
          %300 = vst [vmem:[#allocation2 + $0xe8] sm:$0xff] %v269
          %301 = vst [vmem:[#allocation2 + $0xf0] sm:$0xff] %v269
          %302 = vst [vmem:[#allocation2 + $0xf8] sm:$0xff] %v269
        $region44: #{tpu_custom_call.1} parent=31 // pred_fallthru
          _
        %v303 = vld [vmem:[#allocation2] sm:$0xff]
        %v304 = vld [vmem:[#allocation2 + $0x8] sm:$0xff]
        %v305 = vld [vmem:[#allocation2 + $0x10] sm:$0xff]
        %v306 = vld [vmem:[#allocation2 + $0x18] sm:$0xff]
        %v307 = vld [vmem:[#allocation2 + $0x20] sm:$0xff]
        %v308 = vld [vmem:[#allocation2 + $0x28] sm:$0xff]
        %v309 = vld [vmem:[#allocation2 + $0x30] sm:$0xff]
        %v310 = vld [vmem:[#allocation2 + $0x38] sm:$0xff]
        %v311 = vld [vmem:[#allocation2 + $0x40] sm:$0xff]
        %v312 = vld [vmem:[#allocation2 + $0x48] sm:$0xff]
        %v313 = vld [vmem:[#allocation2 + $0x50] sm:$0xff]
        %v314 = vld [vmem:[#allocation2 + $0x58] sm:$0xff]
        %v315 = vld [vmem:[#allocation2 + $0x60] sm:$0xff]
        %v316 = vld [vmem:[#allocation2 + $0x68] sm:$0xff]
        %v317 = vld [vmem:[#allocation2 + $0x70] sm:$0xff]
        %v318 = vld [vmem:[#allocation2 + $0x78] sm:$0xff]
        %v319 = vld [vmem:[#allocation2 + $0x80] sm:$0xff]
        %v320 = vld [vmem:[#allocation2 + $0x88] sm:$0xff]
        %v321 = vld [vmem:[#allocation2 + $0x90] sm:$0xff]
        %v322 = vld [vmem:[#allocation2 + $0x98] sm:$0xff]
        %v323 = vld [vmem:[#allocation2 + $0xa0] sm:$0xff]
        %v324 = vld [vmem:[#allocation2 + $0xa8] sm:$0xff]
        %v325 = vld [vmem:[#allocation2 + $0xb0] sm:$0xff]
        %v326 = vld [vmem:[#allocation2 + $0xb8] sm:$0xff]
        %v327 = vld [vmem:[#allocation2 + $0xc0] sm:$0xff]
        %v328 = vld [vmem:[#allocation2 + $0xc8] sm:$0xff]
        %v329 = vld [vmem:[#allocation2 + $0xd0] sm:$0xff]
        %v330 = vld [vmem:[#allocation2 + $0xd8] sm:$0xff]
        %v331 = vld [vmem:[#allocation2 + $0xe0] sm:$0xff]
        %v332 = vld [vmem:[#allocation2 + $0xe8] sm:$0xff]
        %v333 = vld [vmem:[#allocation2 + $0xf0] sm:$0xff]
        %v334 = vld [vmem:[#allocation2 + $0xf8] sm:$0xff]
        %v335 = vld [vmem:[%s222] sm:$0xff]
        %v336 = vld [vmem:[%s222 + $0x8] sm:$0xff]
        %v337 = vld [vmem:[%s222 + $0x10] sm:$0xff]
        %v338 = vld [vmem:[%s222 + $0x18] sm:$0xff]
        %v339 = vld [vmem:[%s222 + $0x20] sm:$0xff]
        %v340 = vld [vmem:[%s222 + $0x28] sm:$0xff]
        %v341 = vld [vmem:[%s222 + $0x30] sm:$0xff]
        %v342 = vld [vmem:[%s222 + $0x38] sm:$0xff]
        %v343 = vld [vmem:[%s222 + $0x40] sm:$0xff]
        %v344 = vld [vmem:[%s222 + $0x48] sm:$0xff]
        %v345 = vld [vmem:[%s222 + $0x50] sm:$0xff]
        %v346 = vld [vmem:[%s222 + $0x58] sm:$0xff]
        %v347 = vld [vmem:[%s222 + $0x60] sm:$0xff]
        %v348 = vld [vmem:[%s222 + $0x68] sm:$0xff]
        %v349 = vld [vmem:[%s222 + $0x70] sm:$0xff]
        %v350 = vld [vmem:[%s222 + $0x78] sm:$0xff]
        %v351 = vld [vmem:[%s222 + $0x80] sm:$0xff]
        %v352 = vld [vmem:[%s222 + $0x88] sm:$0xff]
        %v353 = vld [vmem:[%s222 + $0x90] sm:$0xff]
        %v354 = vld [vmem:[%s222 + $0x98] sm:$0xff]
        %v355 = vld [vmem:[%s222 + $0xa0] sm:$0xff]
        %v356 = vld [vmem:[%s222 + $0xa8] sm:$0xff]
        %v357 = vld [vmem:[%s222 + $0xb0] sm:$0xff]
        %v358 = vld [vmem:[%s222 + $0xb8] sm:$0xff]
        %v359 = vld [vmem:[%s222 + $0xc0] sm:$0xff]
        %v360 = vld [vmem:[%s222 + $0xc8] sm:$0xff]
        %v361 = vld [vmem:[%s222 + $0xd0] sm:$0xff]
        %v362 = vld [vmem:[%s222 + $0xd8] sm:$0xff]
        %v363 = vld [vmem:[%s222 + $0xe0] sm:$0xff]
        %v364 = vld [vmem:[%s222 + $0xe8] sm:$0xff]
        %v365 = vld [vmem:[%s222 + $0xf0] sm:$0xff]
        %v366 = vld [vmem:[%s222 + $0xf8] sm:$0xff]
        %v367 = vld [vmem:[#allocation6] sm:$0xf]
        %v368 = vld [vmem:[#allocation6 + $0x4] sm:$0xf]
        %v369 = vld [vmem:[#allocation6 + $0x8] sm:$0xf]
        %v370 = vld [vmem:[#allocation6 + $0xc] sm:$0xf]
        %v371 = vld [vmem:[#allocation6 + $0x10] sm:$0xf]
        %v372 = vld [vmem:[#allocation6 + $0x14] sm:$0xf]
        %v373 = vld [vmem:[#allocation6 + $0x18] sm:$0xf]
        %v374 = vld [vmem:[#allocation6 + $0x1c] sm:$0xf]
        %v375 = vld [vmem:[#allocation6 + $0x20] sm:$0xf]
        %v376 = vld [vmem:[#allocation6 + $0x24] sm:$0xf]
        %v377 = vld [vmem:[#allocation6 + $0x28] sm:$0xf]
        %v378 = vld [vmem:[#allocation6 + $0x2c] sm:$0xf]
        %v379 = vld [vmem:[#allocation6 + $0x30] sm:$0xf]
        %v380 = vld [vmem:[#allocation6 + $0x34] sm:$0xf]
        %v381 = vld [vmem:[#allocation6 + $0x38] sm:$0xf]
        %v382 = vld [vmem:[#allocation6 + $0x3c] sm:$0xf]
        %v383 = vld [vmem:[#allocation6 + $0x40] sm:$0xf]
        %v384 = vld [vmem:[#allocation6 + $0x44] sm:$0xf]
        %v385 = vld [vmem:[#allocation6 + $0x48] sm:$0xf]
        %v386 = vld [vmem:[#allocation6 + $0x4c] sm:$0xf]
        %v387 = vld [vmem:[#allocation6 + $0x50] sm:$0xf]
        %v388 = vld [vmem:[#allocation6 + $0x54] sm:$0xf]
        %v389 = vld [vmem:[#allocation6 + $0x58] sm:$0xf]
        %v390 = vld [vmem:[#allocation6 + $0x5c] sm:$0xf]
        %v391 = vld [vmem:[#allocation6 + $0x60] sm:$0xf]
        %v392 = vld [vmem:[#allocation6 + $0x64] sm:$0xf]
        %v393 = vld [vmem:[#allocation6 + $0x68] sm:$0xf]
        %v394 = vld [vmem:[#allocation6 + $0x6c] sm:$0xf]
        %v395 = vld [vmem:[#allocation6 + $0x70] sm:$0xf]
        %v396 = vld [vmem:[#allocation6 + $0x74] sm:$0xf]
        %v397 = vld [vmem:[#allocation6 + $0x78] sm:$0xf]
        %v398 = vld [vmem:[#allocation6 + $0x7c] sm:$0xf]
        %v431 = vunpack.c.l.b16 %v335
        %v432 = vunpack.c.h.b16 %v335
        %v433 = vunpack.c.l.b16 %v336
        %v434 = vunpack.c.h.b16 %v336
        %v435 = vunpack.c.l.b16 %v337
        %v436 = vunpack.c.h.b16 %v337
        %v437 = vunpack.c.l.b16 %v338
        %v438 = vunpack.c.h.b16 %v338
        %v439 = vunpack.c.l.b16 %v339
        %v440 = vunpack.c.h.b16 %v339
        %v441 = vunpack.c.l.b16 %v340
        %v442 = vunpack.c.h.b16 %v340
        %v443 = vunpack.c.l.b16 %v341
        %v444 = vunpack.c.h.b16 %v341
        %v445 = vunpack.c.l.b16 %v342
        %v446 = vunpack.c.h.b16 %v342
        %v447 = vunpack.c.l.b16 %v343
        %v448 = vunpack.c.h.b16 %v343
        %v449 = vunpack.c.l.b16 %v344
        %v450 = vunpack.c.h.b16 %v344
        %v451 = vunpack.c.l.b16 %v345
        %v452 = vunpack.c.h.b16 %v345
        %v453 = vunpack.c.l.b16 %v346
        %v454 = vunpack.c.h.b16 %v346
        %v455 = vunpack.c.l.b16 %v347
        %v456 = vunpack.c.h.b16 %v347
        %v457 = vunpack.c.l.b16 %v348
        %v458 = vunpack.c.h.b16 %v348
        %v459 = vunpack.c.l.b16 %v349
        %v460 = vunpack.c.h.b16 %v349
        %v461 = vunpack.c.l.b16 %v350
        %v462 = vunpack.c.h.b16 %v350
        %v463 = vunpack.c.l.b16 %v351
        %v464 = vunpack.c.h.b16 %v351
        %v465 = vunpack.c.l.b16 %v352
        %v466 = vunpack.c.h.b16 %v352
        %v467 = vunpack.c.l.b16 %v353
        %v468 = vunpack.c.h.b16 %v353
        %v469 = vunpack.c.l.b16 %v354
        %v470 = vunpack.c.h.b16 %v354
        %v471 = vunpack.c.l.b16 %v355
        %v472 = vunpack.c.h.b16 %v355
        %v473 = vunpack.c.l.b16 %v356
        %v474 = vunpack.c.h.b16 %v356
        %v475 = vunpack.c.l.b16 %v357
        %v476 = vunpack.c.h.b16 %v357
        %v477 = vunpack.c.l.b16 %v358
        %v478 = vunpack.c.h.b16 %v358
        %v479 = vunpack.c.l.b16 %v359
        %v480 = vunpack.c.h.b16 %v359
        %v481 = vunpack.c.l.b16 %v360
        %v482 = vunpack.c.h.b16 %v360
        %v483 = vunpack.c.l.b16 %v361
        %v484 = vunpack.c.h.b16 %v361
        %v485 = vunpack.c.l.b16 %v362
        %v486 = vunpack.c.h.b16 %v362
        %v487 = vunpack.c.l.b16 %v363
        %v488 = vunpack.c.h.b16 %v363
        %v489 = vunpack.c.l.b16 %v364
        %v490 = vunpack.c.h.b16 %v364
        %v491 = vunpack.c.l.b16 %v365
        %v492 = vunpack.c.h.b16 %v365
        %v493 = vunpack.c.l.b16 %v366
        %v494 = vunpack.c.h.b16 %v366
        %v495 = vpack.c.b16 %v433, %v431
        %v496 = vpack.c.b16 %v434, %v432
        %v497 = vpack.c.b16 %v437, %v435
        %v498 = vpack.c.b16 %v438, %v436
        %v499 = vpack.c.b16 %v441, %v439
        %v500 = vpack.c.b16 %v442, %v440
        %v501 = vpack.c.b16 %v445, %v443
        %v502 = vpack.c.b16 %v446, %v444
        %v503 = vpack.c.b16 %v449, %v447
        %v504 = vpack.c.b16 %v450, %v448
        %v505 = vpack.c.b16 %v453, %v451
        %v506 = vpack.c.b16 %v454, %v452
        %v507 = vpack.c.b16 %v457, %v455
        %v508 = vpack.c.b16 %v458, %v456
        %v509 = vpack.c.b16 %v461, %v459
        %v510 = vpack.c.b16 %v462, %v460
        %v511 = vpack.c.b16 %v465, %v463
        %v512 = vpack.c.b16 %v466, %v464
        %v513 = vpack.c.b16 %v469, %v467
        %v514 = vpack.c.b16 %v470, %v468
        %v515 = vpack.c.b16 %v473, %v471
        %v516 = vpack.c.b16 %v474, %v472
        %v517 = vpack.c.b16 %v477, %v475
        %v518 = vpack.c.b16 %v478, %v476
        %v519 = vpack.c.b16 %v481, %v479
        %v520 = vpack.c.b16 %v482, %v480
        %v521 = vpack.c.b16 %v485, %v483
        %v522 = vpack.c.b16 %v486, %v484
        %v523 = vpack.c.b16 %v489, %v487
        %v524 = vpack.c.b16 %v490, %v488
        %v525 = vpack.c.b16 %v493, %v491
        %v526 = vpack.c.b16 %v494, %v492
        %v591 = vunpack.c.l.b16 %v367
        %v592 = vunpack.c.l.b16 %v368
        %v593 = vunpack.c.l.b16 %v369
        %v594 = vunpack.c.l.b16 %v370
        %v595 = vunpack.c.l.b16 %v371
        %v596 = vunpack.c.l.b16 %v372
        %v597 = vunpack.c.l.b16 %v373
        %v598 = vunpack.c.l.b16 %v374
        %v599 = vunpack.c.l.b16 %v375
        %v600 = vunpack.c.l.b16 %v376
        %v601 = vunpack.c.l.b16 %v377
        %v602 = vunpack.c.l.b16 %v378
        %v603 = vunpack.c.l.b16 %v379
        %v604 = vunpack.c.l.b16 %v380
        %v605 = vunpack.c.l.b16 %v381
        %v606 = vunpack.c.l.b16 %v382
        %v607 = vunpack.c.l.b16 %v383
        %v608 = vunpack.c.l.b16 %v384
        %v609 = vunpack.c.l.b16 %v385
        %v610 = vunpack.c.l.b16 %v386
        %v611 = vunpack.c.l.b16 %v387
        %v612 = vunpack.c.l.b16 %v388
        %v613 = vunpack.c.l.b16 %v389
        %v614 = vunpack.c.l.b16 %v390
        %v615 = vunpack.c.l.b16 %v391
        %v616 = vunpack.c.l.b16 %v392
        %v617 = vunpack.c.l.b16 %v393
        %v618 = vunpack.c.l.b16 %v394
        %v619 = vunpack.c.l.b16 %v395
        %v620 = vunpack.c.l.b16 %v396
        %v621 = vunpack.c.l.b16 %v397
        %v622 = vunpack.c.l.b16 %v398
        %v623 = vpack.c.b16 %v592, %v591
        %v624 = vpack.c.b16 %v594, %v593
        %v625 = vpack.c.b16 %v596, %v595
        %v626 = vpack.c.b16 %v598, %v597
        %v627 = vpack.c.b16 %v600, %v599
        %v628 = vpack.c.b16 %v602, %v601
        %v629 = vpack.c.b16 %v604, %v603
        %v630 = vpack.c.b16 %v606, %v605
        %v631 = vpack.c.b16 %v608, %v607
        %v632 = vpack.c.b16 %v610, %v609
        %v633 = vpack.c.b16 %v612, %v611
        %v634 = vpack.c.b16 %v614, %v613
        %v635 = vpack.c.b16 %v616, %v615
        %v636 = vpack.c.b16 %v618, %v617
        %v637 = vpack.c.b16 %v620, %v619
        %v638 = vpack.c.b16 %v622, %v621
        %655 = vmatprep.subr.bf16.mxu0 0
        %656 = vmatpush1.bf16.msra.mxu0 %v623
        %657 = vmatprep.subr.bf16.mxu0 0
        %658 = vmatpush1.bf16.msra.mxu0 %v624
        %659 = vmatprep.subr.bf16.mxu0 0
        %660 = vmatpush1.bf16.msra.mxu0 %v625
        %661 = vmatprep.subr.bf16.mxu0 0
        %662 = vmatpush1.bf16.msra.mxu0 %v626
        %663 = vmatprep.subr.bf16.mxu0 0
        %664 = vmatpush1.bf16.msra.mxu0 %v627
        %665 = vmatprep.subr.bf16.mxu0 0
        %666 = vmatpush1.bf16.msra.mxu0 %v628
        %667 = vmatprep.subr.bf16.mxu0 0
        %668 = vmatpush1.bf16.msra.mxu0 %v629
        %669 = vmatprep.subr.bf16.mxu0 0
        %670 = vmatpush1.bf16.msra.mxu0 %v630
        %671 = vmatprep.subr.bf16.mxu0 0
        %672 = vmatpush1.bf16.msra.mxu0 %v631
        %673 = vmatprep.subr.bf16.mxu0 0
        %674 = vmatpush1.bf16.msra.mxu0 %v632
        %675 = vmatprep.subr.bf16.mxu0 0
        %676 = vmatpush1.bf16.msra.mxu0 %v633
        %677 = vmatprep.subr.bf16.mxu0 0
        %678 = vmatpush1.bf16.msra.mxu0 %v634
        %679 = vmatprep.subr.bf16.mxu0 0
        %680 = vmatpush1.bf16.msra.mxu0 %v635
        %681 = vmatprep.subr.bf16.mxu0 0
        %682 = vmatpush1.bf16.msra.mxu0 %v636
        %683 = vmatprep.subr.bf16.mxu0 0
        %684 = vmatpush1.bf16.msra.mxu0 %v637
        %685 = vmatprep.subr.bf16.mxu0 0
        %686 = vmatpush1.bf16.msra.mxu0 %v638
        %687 = vmatprep.mubr.bf16.mxu0 %v496
        %688 = vmatmul.mubr.bf16.gmra.mrb[0].mxu0 %v495
        %v689 = vpop.f32.mrb[0].mxu0
        %v690 = vadd.f32 0.0, %v689
        %v691 = vpop.f32.mrb[0].mxu0
        %v692 = vpop.f32.mrb[0].mxu0
        %v693 = vadd.f32 0.0, %v692
        %v694 = vpop.f32.mrb[0].mxu0
        %695 = vmatprep.mubr.bf16.mxu0 %v498
        %696 = vmatmul.mubr.bf16.gmra.mrb[0].mxu0 %v497
        %v697 = vpop.f32.mrb[0].mxu0
        %v698 = vadd.f32 0.0, %v697
        %v699 = vpop.f32.mrb[0].mxu0
        %v700 = vpop.f32.mrb[0].mxu0
        %v701 = vadd.f32 0.0, %v700
        %v702 = vpop.f32.mrb[0].mxu0
        %703 = vmatprep.mubr.bf16.mxu0 %v500
        %704 = vmatmul.mubr.bf16.gmra.mrb[0].mxu0 %v499
        %v705 = vpop.f32.mrb[0].mxu0
        %v706 = vadd.f32 0.0, %v705
        %v707 = vpop.f32.mrb[0].mxu0
        %v708 = vpop.f32.mrb[0].mxu0
        %v709 = vadd.f32 0.0, %v708
        %v710 = vpop.f32.mrb[0].mxu0
        %711 = vmatprep.mubr.bf16.mxu0 %v502
        %712 = vmatmul.mubr.bf16.gmra.mrb[0].mxu0 %v501
        %v713 = vpop.f32.mrb[0].mxu0
        %v714 = vadd.f32 0.0, %v713
        %v715 = vpop.f32.mrb[0].mxu0
        %v716 = vpop.f32.mrb[0].mxu0
        %v717 = vadd.f32 0.0, %v716
        %v718 = vpop.f32.mrb[0].mxu0
        %719 = vmatprep.mubr.bf16.mxu0 %v504
        %720 = vmatmul.mubr.bf16.gmra.mrb[0].mxu0 %v503
        %v721 = vpop.f32.mrb[0].mxu0
        %v722 = vadd.f32 0.0, %v721
        %v723 = vpop.f32.mrb[0].mxu0
        %v724 = vpop.f32.mrb[0].mxu0
        %v725 = vadd.f32 0.0, %v724
        %v726 = vpop.f32.mrb[0].mxu0
        %727 = vmatprep.mubr.bf16.mxu0 %v506
        %728 = vmatmul.mubr.bf16.gmra.mrb[0].mxu0 %v505
        %v729 = vpop.f32.mrb[0].mxu0
        %v730 = vadd.f32 0.0, %v729
        %v731 = vpop.f32.mrb[0].mxu0
        %v732 = vpop.f32.mrb[0].mxu0
        %v733 = vadd.f32 0.0, %v732
        %v734 = vpop.f32.mrb[0].mxu0
        %735 = vmatprep.mubr.bf16.mxu0 %v508
        %736 = vmatmul.mubr.bf16.gmra.mrb[0].mxu0 %v507
        %v737 = vpop.f32.mrb[0].mxu0
        %v738 = vadd.f32 0.0, %v737
        %v739 = vpop.f32.mrb[0].mxu0
        %v740 = vpop.f32.mrb[0].mxu0
        %v741 = vadd.f32 0.0, %v740
        %v742 = vpop.f32.mrb[0].mxu0
        %743 = vmatprep.mubr.bf16.mxu0 %v510
        %744 = vmatmul.mubr.bf16.gmra.mrb[0].mxu0 %v509
        %v745 = vpop.f32.mrb[0].mxu0
        %v746 = vadd.f32 0.0, %v745
        %v747 = vpop.f32.mrb[0].mxu0
        %v748 = vpop.f32.mrb[0].mxu0
        %v749 = vadd.f32 0.0, %v748
        %v750 = vpop.f32.mrb[0].mxu0
        %751 = vmatprep.mubr.bf16.mxu0 %v512
        %752 = vmatmul.mubr.bf16.gmra.mrb[0].mxu0 %v511
        %v753 = vpop.f32.mrb[0].mxu0
        %v754 = vadd.f32 0.0, %v753
        %v755 = vpop.f32.mrb[0].mxu0
        %v756 = vpop.f32.mrb[0].mxu0
        %v757 = vadd.f32 0.0, %v756
        %v758 = vpop.f32.mrb[0].mxu0
        %759 = vmatprep.mubr.bf16.mxu0 %v514
        %760 = vmatmul.mubr.bf16.gmra.mrb[0].mxu0 %v513
        %v761 = vpop.f32.mrb[0].mxu0
        %v762 = vadd.f32 0.0, %v761
        %v763 = vpop.f32.mrb[0].mxu0
        %v764 = vpop.f32.mrb[0].mxu0
        %v765 = vadd.f32 0.0, %v764
        %v766 = vpop.f32.mrb[0].mxu0
        %767 = vmatprep.mubr.bf16.mxu0 %v516
        %768 = vmatmul.mubr.bf16.gmra.mrb[0].mxu0 %v515
        %v769 = vpop.f32.mrb[0].mxu0
        %v770 = vadd.f32 0.0, %v769
        %v771 = vpop.f32.mrb[0].mxu0
        %v772 = vpop.f32.mrb[0].mxu0
        %v773 = vadd.f32 0.0, %v772
        %v774 = vpop.f32.mrb[0].mxu0
        %775 = vmatprep.mubr.bf16.mxu0 %v518
        %776 = vmatmul.mubr.bf16.gmra.mrb[0].mxu0 %v517
        %v777 = vpop.f32.mrb[0].mxu0
        %v778 = vadd.f32 0.0, %v777
        %v779 = vpop.f32.mrb[0].mxu0
        %v780 = vpop.f32.mrb[0].mxu0
        %v781 = vadd.f32 0.0, %v780
        %v782 = vpop.f32.mrb[0].mxu0
        %783 = vmatprep.mubr.bf16.mxu0 %v520
        %784 = vmatmul.mubr.bf16.gmra.mrb[0].mxu0 %v519
        %v785 = vpop.f32.mrb[0].mxu0
        %v786 = vadd.f32 0.0, %v785
        %v787 = vpop.f32.mrb[0].mxu0
        %v788 = vpop.f32.mrb[0].mxu0
        %v789 = vadd.f32 0.0, %v788
        %v790 = vpop.f32.mrb[0].mxu0
        %791 = vmatprep.mubr.bf16.mxu0 %v522
        %792 = vmatmul.mubr.bf16.gmra.mrb[0].mxu0 %v521
        %v793 = vpop.f32.mrb[0].mxu0
        %v794 = vadd.f32 0.0, %v793
        %v795 = vpop.f32.mrb[0].mxu0
        %v796 = vpop.f32.mrb[0].mxu0
        %v797 = vadd.f32 0.0, %v796
        %v798 = vpop.f32.mrb[0].mxu0
        %799 = vmatprep.mubr.bf16.mxu0 %v524
        %800 = vmatmul.mubr.bf16.gmra.mrb[0].mxu0 %v523
        %v801 = vpop.f32.mrb[0].mxu0
        %v802 = vadd.f32 0.0, %v801
        %v803 = vpop.f32.mrb[0].mxu0
        %v804 = vpop.f32.mrb[0].mxu0
        %v805 = vadd.f32 0.0, %v804
        %v806 = vpop.f32.mrb[0].mxu0
        %807 = vmatprep.mubr.bf16.mxu0 %v526
        %808 = vmatmul.mubr.bf16.gmra.mrb[0].mxu0 %v525
        %v809 = vpop.f32.mrb[0].mxu0
        %v810 = vadd.f32 0.0, %v809
        %v811 = vpop.f32.mrb[0].mxu0
        %v812 = vpop.f32.mrb[0].mxu0
        %v813 = vadd.f32 0.0, %v812
        %v814 = vpop.f32.mrb[0].mxu0
        %815 = vdwg.mxu0
        %v816 = vadd.f32 %v303, %v690
        %v817 = vadd.f32 %v304, %v693
        %v818 = vadd.f32 %v305, %v698
        %v819 = vadd.f32 %v306, %v701
        %v820 = vadd.f32 %v307, %v706
        %v821 = vadd.f32 %v308, %v709
        %v822 = vadd.f32 %v309, %v714
        %v823 = vadd.f32 %v310, %v717
        %v824 = vadd.f32 %v311, %v722
        %v825 = vadd.f32 %v312, %v725
        %v826 = vadd.f32 %v313, %v730
        %v827 = vadd.f32 %v314, %v733
        %v828 = vadd.f32 %v315, %v738
        %v829 = vadd.f32 %v316, %v741
        %v830 = vadd.f32 %v317, %v746
        %v831 = vadd.f32 %v318, %v749
        %v832 = vadd.f32 %v319, %v754
        %v833 = vadd.f32 %v320, %v757
        %v834 = vadd.f32 %v321, %v762
        %v835 = vadd.f32 %v322, %v765
        %v836 = vadd.f32 %v323, %v770
        %v837 = vadd.f32 %v324, %v773
        %v838 = vadd.f32 %v325, %v778
        %v839 = vadd.f32 %v326, %v781
        %v840 = vadd.f32 %v327, %v786
        %v841 = vadd.f32 %v328, %v789
        %v842 = vadd.f32 %v329, %v794
        %v843 = vadd.f32 %v330, %v797
        %v844 = vadd.f32 %v331, %v802
        %v845 = vadd.f32 %v332, %v805
        %v846 = vadd.f32 %v333, %v810
        %v847 = vadd.f32 %v334, %v813
        %848 = vst [vmem:[#allocation2] sm:$0xff] %v816
        %849 = vst [vmem:[#allocation2 + $0x8] sm:$0xff] %v817
        %850 = vst [vmem:[#allocation2 + $0x10] sm:$0xff] %v818
        %851 = vst [vmem:[#allocation2 + $0x18] sm:$0xff] %v819
        %852 = vst [vmem:[#allocation2 + $0x20] sm:$0xff] %v820
        %853 = vst [vmem:[#allocation2 + $0x28] sm:$0xff] %v821
        %854 = vst [vmem:[#allocation2 + $0x30] sm:$0xff] %v822
        %855 = vst [vmem:[#allocation2 + $0x38] sm:$0xff] %v823
        %856 = vst [vmem:[#allocation2 + $0x40] sm:$0xff] %v824
        %857 = vst [vmem:[#allocation2 + $0x48] sm:$0xff] %v825
        %858 = vst [vmem:[#allocation2 + $0x50] sm:$0xff] %v826
        %859 = vst [vmem:[#allocation2 + $0x58] sm:$0xff] %v827
        %860 = vst [vmem:[#allocation2 + $0x60] sm:$0xff] %v828
        %861 = vst [vmem:[#allocation2 + $0x68] sm:$0xff] %v829
        %862 = vst [vmem:[#allocation2 + $0x70] sm:$0xff] %v830
        %863 = vst [vmem:[#allocation2 + $0x78] sm:$0xff] %v831
        %864 = vst [vmem:[#allocation2 + $0x80] sm:$0xff] %v832
        %865 = vst [vmem:[#allocation2 + $0x88] sm:$0xff] %v833
        %866 = vst [vmem:[#allocation2 + $0x90] sm:$0xff] %v834
        %867 = vst [vmem:[#allocation2 + $0x98] sm:$0xff] %v835
        %868 = vst [vmem:[#allocation2 + $0xa0] sm:$0xff] %v836
        %869 = vst [vmem:[#allocation2 + $0xa8] sm:$0xff] %v837
        %870 = vst [vmem:[#allocation2 + $0xb0] sm:$0xff] %v838
        %871 = vst [vmem:[#allocation2 + $0xb8] sm:$0xff] %v839
        %872 = vst [vmem:[#allocation2 + $0xc0] sm:$0xff] %v840
        %873 = vst [vmem:[#allocation2 + $0xc8] sm:$0xff] %v841
        %874 = vst [vmem:[#allocation2 + $0xd0] sm:$0xff] %v842
        %875 = vst [vmem:[#allocation2 + $0xd8] sm:$0xff] %v843
        %876 = vst [vmem:[#allocation2 + $0xe0] sm:$0xff] %v844
        %877 = vst [vmem:[#allocation2 + $0xe8] sm:$0xff] %v845
        %878 = vst [vmem:[#allocation2 + $0xf0] sm:$0xff] %v846
        %879 = vst [vmem:[#allocation2 + $0xf8] sm:$0xff] %v847
        // Predicated region
        $region45: #{tpu_custom_call.1} parent=31 // pred_check
          %p880 = pneg %p260
        $region46: #{tpu_custom_call.1} parent=31 // pred_check_branch
          %882 = sbr.rel (%p880) target = $region48
        $region47: #{tpu_custom_call.1} parent=31 // pred_region
          %v883 = vld [vmem:[#allocation2] sm:$0xff]
          %v884 = vld [vmem:[#allocation2 + $0x8] sm:$0xff]
          %v885 = vld [vmem:[#allocation2 + $0x10] sm:$0xff]
          %v886 = vld [vmem:[#allocation2 + $0x18] sm:$0xff]
          %v887 = vld [vmem:[#allocation2 + $0x20] sm:$0xff]
          %v888 = vld [vmem:[#allocation2 + $0x28] sm:$0xff]
          %v889 = vld [vmem:[#allocation2 + $0x30] sm:$0xff]
          %v890 = vld [vmem:[#allocation2 + $0x38] sm:$0xff]
          %v891 = vld [vmem:[#allocation2 + $0x40] sm:$0xff]
          %v892 = vld [vmem:[#allocation2 + $0x48] sm:$0xff]
          %v893 = vld [vmem:[#allocation2 + $0x50] sm:$0xff]
          %v894 = vld [vmem:[#allocation2 + $0x58] sm:$0xff]
          %v895 = vld [vmem:[#allocation2 + $0x60] sm:$0xff]
          %v896 = vld [vmem:[#allocation2 + $0x68] sm:$0xff]
          %v897 = vld [vmem:[#allocation2 + $0x70] sm:$0xff]
          %v898 = vld [vmem:[#allocation2 + $0x78] sm:$0xff]
          %v899 = vld [vmem:[#allocation2 + $0x80] sm:$0xff]
          %v900 = vld [vmem:[#allocation2 + $0x88] sm:$0xff]
          %v901 = vld [vmem:[#allocation2 + $0x90] sm:$0xff]
          %v902 = vld [vmem:[#allocation2 + $0x98] sm:$0xff]
          %v903 = vld [vmem:[#allocation2 + $0xa0] sm:$0xff]
          %v904 = vld [vmem:[#allocation2 + $0xa8] sm:$0xff]
          %v905 = vld [vmem:[#allocation2 + $0xb0] sm:$0xff]
          %v906 = vld [vmem:[#allocation2 + $0xb8] sm:$0xff]
          %v907 = vld [vmem:[#allocation2 + $0xc0] sm:$0xff]
          %v908 = vld [vmem:[#allocation2 + $0xc8] sm:$0xff]
          %v909 = vld [vmem:[#allocation2 + $0xd0] sm:$0xff]
          %v910 = vld [vmem:[#allocation2 + $0xd8] sm:$0xff]
          %v911 = vld [vmem:[#allocation2 + $0xe0] sm:$0xff]
          %v912 = vld [vmem:[#allocation2 + $0xe8] sm:$0xff]
          %v913 = vld [vmem:[#allocation2 + $0xf0] sm:$0xff]
          %v914 = vld [vmem:[#allocation2 + $0xf8] sm:$0xff]
          %v915 = vpack.c.bf16 %v884, %v883
          %v916 = vpack.c.bf16 %v886, %v885
          %v917 = vpack.c.bf16 %v888, %v887
          %v918 = vpack.c.bf16 %v890, %v889
          %v919 = vpack.c.bf16 %v892, %v891
          %v920 = vpack.c.bf16 %v894, %v893
          %v921 = vpack.c.bf16 %v896, %v895
          %v922 = vpack.c.bf16 %v898, %v897
          %v923 = vpack.c.bf16 %v900, %v899
          %v924 = vpack.c.bf16 %v902, %v901
          %v925 = vpack.c.bf16 %v904, %v903
          %v926 = vpack.c.bf16 %v906, %v905
          %v927 = vpack.c.bf16 %v908, %v907
          %v928 = vpack.c.bf16 %v910, %v909
          %v929 = vpack.c.bf16 %v912, %v911
          %v930 = vpack.c.bf16 %v914, %v913
          %v947 = vunpack.c.l.b16 %v915
          %v948 = vunpack.c.h.b16 %v915
          %v949 = vunpack.c.l.b16 %v916
          %v950 = vunpack.c.h.b16 %v916
          %v951 = vunpack.c.l.b16 %v917
          %v952 = vunpack.c.h.b16 %v917
          %v953 = vunpack.c.l.b16 %v918
          %v954 = vunpack.c.h.b16 %v918
          %v955 = vunpack.c.l.b16 %v919
          %v956 = vunpack.c.h.b16 %v919
          %v957 = vunpack.c.l.b16 %v920
          %v958 = vunpack.c.h.b16 %v920
          %v959 = vunpack.c.l.b16 %v921
          %v960 = vunpack.c.h.b16 %v921
          %v961 = vunpack.c.l.b16 %v922
          %v962 = vunpack.c.h.b16 %v922
          %v963 = vunpack.c.l.b16 %v923
          %v964 = vunpack.c.h.b16 %v923
          %v965 = vunpack.c.l.b16 %v924
          %v966 = vunpack.c.h.b16 %v924
          %v967 = vunpack.c.l.b16 %v925
          %v968 = vunpack.c.h.b16 %v925
          %v969 = vunpack.c.l.b16 %v926
          %v970 = vunpack.c.h.b16 %v926
          %v971 = vunpack.c.l.b16 %v927
          %v972 = vunpack.c.h.b16 %v927
          %v973 = vunpack.c.l.b16 %v928
          %v974 = vunpack.c.h.b16 %v928
          %v975 = vunpack.c.l.b16 %v929
          %v976 = vunpack.c.h.b16 %v929
          %v977 = vunpack.c.l.b16 %v930
          %v978 = vunpack.c.h.b16 %v930
          %v979 = vpack.c.b16 %v947, %v947
          %v980 = vpack.c.b16 %v948, %v948
          %v981 = vpack.c.b16 %v949, %v949
          %v982 = vpack.c.b16 %v950, %v950
          %v983 = vpack.c.b16 %v951, %v951
          %v984 = vpack.c.b16 %v952, %v952
          %v985 = vpack.c.b16 %v953, %v953
          %v986 = vpack.c.b16 %v954, %v954
          %v987 = vpack.c.b16 %v955, %v955
          %v988 = vpack.c.b16 %v956, %v956
          %v989 = vpack.c.b16 %v957, %v957
          %v990 = vpack.c.b16 %v958, %v958
          %v991 = vpack.c.b16 %v959, %v959
          %v992 = vpack.c.b16 %v960, %v960
          %v993 = vpack.c.b16 %v961, %v961
          %v994 = vpack.c.b16 %v962, %v962
          %v995 = vpack.c.b16 %v963, %v963
          %v996 = vpack.c.b16 %v964, %v964
          %v997 = vpack.c.b16 %v965, %v965
          %v998 = vpack.c.b16 %v966, %v966
          %v999 = vpack.c.b16 %v967, %v967
          %v1000 = vpack.c.b16 %v968, %v968
          %v1001 = vpack.c.b16 %v969, %v969
          %v1002 = vpack.c.b16 %v970, %v970
          %v1003 = vpack.c.b16 %v971, %v971
          %v1004 = vpack.c.b16 %v972, %v972
          %v1005 = vpack.c.b16 %v973, %v973
          %v1006 = vpack.c.b16 %v974, %v974
          %v1007 = vpack.c.b16 %v975, %v975
          %v1008 = vpack.c.b16 %v976, %v976
          %v1009 = vpack.c.b16 %v977, %v977
          %v1010 = vpack.c.b16 %v978, %v978
          %1043 = vst [vmem:[%s251] sm:$0xf] %v979
          %1044 = vst [vmem:[%s251 + $0x4] sm:$0xf] %v980
          %1045 = vst [vmem:[%s251 + $0x8] sm:$0xf] %v981
          %1046 = vst [vmem:[%s251 + $0xc] sm:$0xf] %v982
          %1047 = vst [vmem:[%s251 + $0x10] sm:$0xf] %v983
          %1048 = vst [vmem:[%s251 + $0x14] sm:$0xf] %v984
          %1049 = vst [vmem:[%s251 + $0x18] sm:$0xf] %v985
          %1050 = vst [vmem:[%s251 + $0x1c] sm:$0xf] %v986
          %1051 = vst [vmem:[%s251 + $0x20] sm:$0xf] %v987
          %1052 = vst [vmem:[%s251 + $0x24] sm:$0xf] %v988
          %1053 = vst [vmem:[%s251 + $0x28] sm:$0xf] %v989
          %1054 = vst [vmem:[%s251 + $0x2c] sm:$0xf] %v990
          %1055 = vst [vmem:[%s251 + $0x30] sm:$0xf] %v991
          %1056 = vst [vmem:[%s251 + $0x34] sm:$0xf] %v992
          %1057 = vst [vmem:[%s251 + $0x38] sm:$0xf] %v993
          %1058 = vst [vmem:[%s251 + $0x3c] sm:$0xf] %v994
          %1059 = vst [vmem:[%s251 + $0x40] sm:$0xf] %v995
          %1060 = vst [vmem:[%s251 + $0x44] sm:$0xf] %v996
          %1061 = vst [vmem:[%s251 + $0x48] sm:$0xf] %v997
          %1062 = vst [vmem:[%s251 + $0x4c] sm:$0xf] %v998
          %1063 = vst [vmem:[%s251 + $0x50] sm:$0xf] %v999
          %1064 = vst [vmem:[%s251 + $0x54] sm:$0xf] %v1000
          %1065 = vst [vmem:[%s251 + $0x58] sm:$0xf] %v1001
          %1066 = vst [vmem:[%s251 + $0x5c] sm:$0xf] %v1002
          %1067 = vst [vmem:[%s251 + $0x60] sm:$0xf] %v1003
          %1068 = vst [vmem:[%s251 + $0x64] sm:$0xf] %v1004
          %1069 = vst [vmem:[%s251 + $0x68] sm:$0xf] %v1005
          %1070 = vst [vmem:[%s251 + $0x6c] sm:$0xf] %v1006
          %1071 = vst [vmem:[%s251 + $0x70] sm:$0xf] %v1007
          %1072 = vst [vmem:[%s251 + $0x74] sm:$0xf] %v1008
          %1073 = vst [vmem:[%s251 + $0x78] sm:$0xf] %v1009
          %1074 = vst [vmem:[%s251 + $0x7c] sm:$0xf] %v1010
        $region48: #{tpu_custom_call.1} parent=31 // pred_fallthru
          _
        %s1075 = sand.u32 %s132, 1
        %s1076 = scalar_lea.sflag [#allocation5], %s1075
        %s1077 = sand.u32 %s132, 1
        %s1078 = smul.addr %s1077, 128
        %s1079 = scalar_lea.vmem [#allocation8], %s1078
        // Predicated region
        $region49: #{tpu_custom_call.1} parent=31 // pred_check
          %p1080 = pneg %p142
        $region50: #{tpu_custom_call.1} parent=31 // pred_check_branch
          %1082 = sbr.rel (%p1080) target = $region52
        $region51: #{tpu_custom_call.1} parent=31 // pred_region
          %s1083 = smul.u32 32, %s26
          %s1085 = ssub.s32 2048, 2048
          %1086 = vsyncadd %s1076, %s1085
          %s1087 = sadd.s32 %s27, %s1083
          %s1088 = smul.addr %s1087, 64
          %s1089 = scalar_lea.hbm %s3, %s1088
          %s1090 = sshll.u32 %s1079, 4
          %s1091 = int_to_ptr.vmem [resolvable:$true] %s1090
          %1096 = dma.vmem_to_hbm [thread:$0]  %s1091, 2048, %s1089, %s1076, 64, 64, 4
        $region52: #{tpu_custom_call.1} parent=31 // pred_fallthru
          _
      $region32: #{tpu_custom_call.1} parent=5 // pred_fallthru
        _
      %p1097 = scmp.le.s32.totalorder 2, %s16
      // Predicated region
      $region53: #{tpu_custom_call.1} parent=5 // pred_check
        %p1098 = pneg %p1097
      $region54: #{tpu_custom_call.1} parent=5 // pred_check_branch
        %1100 = sbr.rel (%p1098) target = $region56
      $region55: #{tpu_custom_call.1} parent=5 // pred_region
        %s1101 = ssub.s32 %s16, 2
        // Predicated region
        $region57: #{tpu_custom_call.1} parent=55 // pred_check
          %p1102 = pneg %p148
        $region58: #{tpu_custom_call.1} parent=55 // pred_check_branch
          %1104 = sbr.rel (%p1102) target = $region60
        $region59: #{tpu_custom_call.1} parent=55 // pred_region
          %s1105 = sand.u32 %s133, 1
          %s1106 = scalar_lea.sflag [#allocation5], %s1105
          %s1107 = sand.u32 %s133, 1
          %s1108 = smul.addr %s1107, 128
          %s1109 = scalar_lea.vmem [#allocation8], %s1108
          %1110 = dma.done %s1106, 2048
        $region60: #{tpu_custom_call.1} parent=55 // pred_fallthru
          _
      $region56: #{tpu_custom_call.1} parent=5 // pred_fallthru
        _
    $region6: #{tpu_custom_call.1} parent=1 // loop_footer
      %s20 = sadd.s32 1, %s16
    $region7: #{tpu_custom_call.1} parent=1 // loop_footer_branch
      %15 = sbr.rel target = $region3
    $region8: #{tpu_custom_call.1} parent=1 // loop_exit
      _
    %1111 = vsyncpa [#allocation4], 1
    %s1112 = scalar_lea.sflag [#allocation4], 1
    %1113 = vsyncpa %s1112, 1
    %1114 = vsyncpa [#allocation7], 1
    %1115 = vsyncpa [#allocation5], 1
    %s1116 = scalar_lea.sflag [#allocation5], 1
    %1117 = vsyncpa %s1116, 1

</llo_original>
